<compile_context>
chip_gen: v6e
topology: v6e:2x2x1
jax: 0.10.0
libtpu: 0.0.40
codegen_flags: <defaults>
</compile_context>

<pallas_src>
import math
import functools

import jax
import jax.numpy as jnp
from jax import lax
from jax.experimental import pallas as pl
from jax.experimental.pallas import tpu as pltpu
from jax.scipy.special import erf


# ----------------------------------------------------------------------------
# Glue: nn.Unfold equivalent (pure data movement, plain JAX)
# ----------------------------------------------------------------------------
def unfold(x, k, s, p):
    """PyTorch nn.Unfold(kernel=(k,k), stride=(s,s), padding=(p,p)).

    x: (B, C, H, W) -> (B, C*k*k, Ho*Wo), channel-major then (ki, kj) ordering.
    """
    B, C, H, W = x.shape
    xp = jnp.pad(x, ((0, 0), (0, 0), (p, p), (p, p)))
    Ho = (H + 2 * p - k) // s + 1
    Wo = (W + 2 * p - k) // s + 1
    patches = []
    for i in range(k):
        for j in range(k):
            patches.append(
                xp[:, :, i:i + s * (Ho - 1) + 1:s, j:j + s * (Wo - 1) + 1:s]
            )  # (B, C, Ho, Wo)
    pt = jnp.stack(patches, axis=2)               # (B, C, k*k, Ho, Wo)
    return pt.reshape(B, C * k * k, Ho * Wo)      # matches torch Unfold layout


def _soft_split_tokens(x, kernel_size, stride, padding):
    """DownsampleToken data-movement: cls split, NCHW view, Unfold, cls concat."""
    B, N, C = x.shape
    H = W = int(math.isqrt(N))                    # torch: int(math.sqrt(N))
    x_cls = x[:, :1, :]                           # (B, 1, C)
    xs = x[:, 1:, :].reshape(B, H, W, C).transpose(0, 3, 1, 2)   # (B, C, H, W)
    xs = unfold(xs, kernel_size, stride, padding)                # (B, C*k*k, L)
    xs = jnp.transpose(xs, (0, 2, 1))                            # (B, L, C*k*k)
    kk = kernel_size * kernel_size
    x_cls_rep = jnp.tile(x_cls, (1, 1, kk))       # x_cls.repeat(1,1,dim//C)
    return jnp.concatenate([x_cls_rep, xs], axis=1)              # (B, L+1, dim)


# ----------------------------------------------------------------------------
# Pallas kernel: one Token_transformer block (num_heads=1) on a (Bt, Np, dim) tile
#   * Np is a multiple of 8 (token axis padded in the wrapper); padded key rows
#     are masked to -inf in the softmax, padded query rows are sliced off later.
#   * all output channels are zero-padded to 128 lanes at prep time, so the
#     final store is a natively lane-dense unmasked vst.
# ----------------------------------------------------------------------------
def token_transformer_kernel(x_ref,
                             n1g_ref, n1b_ref,
                             wq_ref, wk_ref, wv_ref,
                             wproj_ref, bproj_ref,
                             n2g_ref, n2b_ref,
                             wfc1_ref, bfc1_ref,
                             wfc2_ref, bfc2_ref,
                             o_ref, *, in_dim, n_valid):
    bt, npad, dim = x_ref.shape
    dp = o_ref.shape[-1]                          # 128-lane padded channel width
    bf16 = jnp.bfloat16
    f32 = jnp.float32

    # ---- norm1 over the full feature dim (f32, VPU) --------------------------
    # reshape (bt, npad, dim) -> (bt*npad, dim) is layout-free: npad % 8 == 0.
    x = x_ref[...].astype(f32).reshape(bt * npad, dim)
    mu = jnp.mean(x, axis=-1, keepdims=True)
    var = jnp.mean(jnp.square(x - mu), axis=-1, keepdims=True)
    xn = ((x - mu) * lax.rsqrt(var + 1e-5) * n1g_ref[...] + n1b_ref[...]).astype(bf16)

    # ---- qkv: bf16 operands, f32 MXU accumulation; softmax scale baked in wq -
    q = jnp.dot(xn, wq_ref[...], preferred_element_type=f32)    # (bt*npad, dp)
    k = jnp.dot(xn, wk_ref[...], preferred_element_type=f32)
    v = jnp.dot(xn, wv_ref[...], preferred_element_type=f32)

    qb = q.reshape(bt, npad, dp).astype(bf16)     # layout-free reshapes
    kb = k.reshape(bt, npad, dp).astype(bf16)
    vb = v.reshape(bt, npad, dp).astype(bf16)

    # ---- single-head attention; padded key rows masked out -------------------
    s = jnp.einsum("bqd,bkd->bqk", qb, kb, preferred_element_type=f32)
    key_idx = lax.broadcasted_iota(jnp.int32, (1, 1, npad), 2)
    s = jnp.where(key_idx < n_valid, s, -1e30)
    s = s - jnp.max(s, axis=-1, keepdims=True)
    p = jnp.exp(s)
    p = p * pl.reciprocal(jnp.sum(p, axis=-1, keepdims=True), approx=True)  # EUP

    av = jnp.einsum("bqk,bkd->bqd", p.astype(bf16), vb,
                    preferred_element_type=f32)
    av2 = av.reshape(bt * npad, dp)

    # ---- proj + v residual:  y = v + proj(attn @ v) ---------------------------
    y = v + (jnp.dot(av2.astype(bf16), wproj_ref[...],
                     preferred_element_type=f32) + bproj_ref[...])

    # ---- norm2 over the valid in_dim channels only ----------------------------
    # Padded channels of y are exactly zero (zero-padded weights/biases), so the
    # E[x^2] - mu^2 form with an explicit 1/in_dim gives the correct statistics.
    inv_d = 1.0 / in_dim
    mu2 = jnp.sum(y, axis=-1, keepdims=True) * inv_d
    ex2 = jnp.sum(y * y, axis=-1, keepdims=True) * inv_d
    var2 = ex2 - mu2 * mu2
    yn = ((y - mu2) * lax.rsqrt(var2 + 1e-5) * n2g_ref[...] + n2b_ref[...]).astype(bf16)

    # ---- MLP (tanh-approx GELU -> EUP) + residual -----------------------------
    h = jnp.dot(yn, wfc1_ref[...], preferred_element_type=f32) + bfc1_ref[...]
    h = 0.5 * h * (1.0 + jnp.tanh(0.7978845608028654 * (h + 0.044715 * h * h * h)))
    h = jnp.dot(h.astype(bf16), wfc2_ref[...],
                preferred_element_type=f32) + bfc2_ref[...]

    out = y + h                                   # (bt*npad, dp), lane-dense
    o_ref[...] = out.reshape(bt, npad, dp).astype(o_ref.dtype)


# ----------------------------------------------------------------------------
# Wrappers
# ----------------------------------------------------------------------------
def _const_spec(a):
    zeros = (0,) * a.ndim
    return pl.BlockSpec(a.shape, lambda i, _z=zeros: _z)


def _pick_bt(B):
    """Largest batch tile that divides B while keeping >=2 grid steps (v7x 2 TCs)."""
    for cand in (8, 4, 2):
        if B % cand == 0 and B // cand >= 2:
            return cand
    return 1


def _prep_params(params, in_dim, dp):
    """Pad output-channel tensors to dp lanes (zeros) and fold the attention
    scale into wq. Cheap trace-time ops on tiny weights."""
    (n1g, n1b, wq, wk, wv, wproj, bproj,
     n2g, n2b, wfc1, bfc1, wfc2, bfc2) = params
    hidden = wfc1.shape[1]
    assert in_dim <= dp, (in_dim, dp)
    assert hidden <= dp, (hidden, dp)
    f32, bf = jnp.float32, jnp.bfloat16
    scale = in_dim ** (-0.5)                      # head_dim = in_dim (1 head)

    def pad_last(a, t):
        return jnp.pad(a, [(0, 0)] * (a.ndim - 1) + [(0, t - a.shape[-1])])

    def pad_first(a, t):
        return jnp.pad(a, [(0, t - a.shape[0])] + [(0, 0)] * (a.ndim - 1))

    wq_p = pad_last(wq.astype(f32) * scale, dp).astype(bf)
    wk_p = pad_last(wk, dp).astype(bf)
    wv_p = pad_last(wv, dp).astype(bf)
    wproj_p = pad_last(pad_first(wproj, dp), dp).astype(bf)
    bproj_p = pad_last(bproj.astype(f32), dp)
    n2g_p = pad_last(n2g.astype(f32), dp)
    n2b_p = pad_last(n2b.astype(f32), dp)
    wfc1_p = pad_last(pad_first(wfc1, dp), dp).astype(bf)
    bfc1_p = pad_last(bfc1.astype(f32), dp)
    wfc2_p = pad_last(pad_first(wfc2, dp), dp).astype(bf)
    bfc2_p = pad_last(bfc2.astype(f32), dp)
    return [n1g.astype(f32), n1b.astype(f32), wq_p, wk_p, wv_p,
            wproj_p, bproj_p, n2g_p, n2b_p, wfc1_p, bfc1_p, wfc2_p, bfc2_p]


def token_transformer(x, params, in_dim, *, bt=None):
    """x: (B, N, dim) -> (B, N, in_dim) f32 via one Pallas call."""
    B, N, C = x.shape
    assert in_dim <= 128, f"out_pad=128 assumes in_dim<=128, got {in_dim}"
    if bt is None:
        bt = _pick_bt(B)
    assert B % bt == 0, (B, bt)

    dp = 128                                      # lane-dense output channels
    npad = ((N + 7) // 8) * 8                     # sublane-aligned token count

    pp = _prep_params(params, in_dim, dp)
    xp = jnp.pad(x, ((0, 0), (0, npad - N), (0, 0))).astype(jnp.bfloat16)

    kernel = functools.partial(token_transformer_kernel,
                               in_dim=in_dim, n_valid=N)
    in_specs = [pl.BlockSpec((bt, npad, C), lambda i: (i, 0, 0))]
    in_specs += [_const_spec(p) for p in pp]
    out_specs = pl.BlockSpec((bt, npad, dp), lambda i: (i, 0, 0))

    out = pl.pallas_call(
        kernel,
        out_shape=jax.ShapeDtypeStruct((B, npad, dp), jnp.bfloat16),
        grid_spec=pltpu.PrefetchScalarGridSpec(
            num_scalar_prefetch=0,
            grid=(B // bt,),
            in_specs=in_specs,
            out_specs=out_specs,
        ),
        compiler_params=pltpu.CompilerParams(
            dimension_semantics=("parallel",),     # megacore / 2-TC v7x
        ),
    )(xp, *pp)
    return out[:, :N, :in_dim].astype(jnp.float32)


def downsample_token_forward(x, params, in_channels, kernel_size,
                             stride=1, padding=1, prev=None, bt=None):
    """DownsampleToken.forward (method='transformer', use_cls_token=True)."""
    tok = _soft_split_tokens(x, kernel_size, stride, padding)    # (B, L+1, dim)
    out = token_transformer(tok, params, in_dim=in_channels, bt=bt)
    return out, prev


# ----------------------------------------------------------------------------
# Pure-JAX f32 reference (mirrors the PyTorch module; exact softmax / erf GELU)
# ----------------------------------------------------------------------------
def _layernorm_ref(x, g, b, eps=1e-5):
    mu = jnp.mean(x, axis=-1, keepdims=True)
    var = jnp.mean(jnp.square(x - mu), axis=-1, keepdims=True)
    return (x - mu) * lax.rsqrt(var + eps) * g + b


def downsample_token_reference(x, params, in_channels, kernel_size,
                               stride=1, padding=1):
    tok = _soft_split_tokens(x, kernel_size, stride, padding)
    (n1g, n1b, wq, wk, wv, wproj, bproj,
     n2g, n2b, wfc1, bfc1, wfc2, bfc2) = [p.astype(jnp.float32) for p in params]
    xn = _layernorm_ref(tok, n1g, n1b)
    q = xn @ wq
    k = xn @ wk
    v = xn @ wv
    s = jnp.einsum("bqd,bkd->bqk", q, k) * (in_channels ** (-0.5))
    p = jax.nn.softmax(s, axis=-1)
    av = jnp.einsum("bqk,bkd->bqd", p, v)
    y = v + (av @ wproj + bproj)
    yn = _layernorm_ref(y, n2g, n2b)
    h = yn @ wfc1 + bfc1
    h = 0.5 * h * (1.0 + erf(h / math.sqrt(2.0)))        # torch nn.GELU (exact)
    h = h @ wfc2 + bfc2
    return y + h


# ----------------------------------------------------------------------------
# Parameter construction (deterministic, synthetic)
# ----------------------------------------------------------------------------
def make_token_transformer_params(key, dim, in_dim, mlp_ratio=1.0):
    hidden = int(in_dim * mlp_ratio)
    ks = jax.random.split(key, 8)
    bf = jnp.bfloat16
    n1g = jnp.ones((1, dim), jnp.float32)
    n1b = jnp.zeros((1, dim), jnp.float32)
    # Linear weights pre-transposed to (in, out); MXU weights stored in bf16.
    wq = (0.02 * jax.random.normal(ks[0], (dim, in_dim), jnp.float32)).astype(bf)
    wk = (0.02 * jax.random.normal(ks[1], (dim, in_dim), jnp.float32)).astype(bf)
    wv = (0.02 * jax.random.normal(ks[2], (dim, in_dim), jnp.float32)).astype(bf)
    wproj = (0.02 * jax.random.normal(ks[3], (in_dim, in_dim), jnp.float32)).astype(bf)
    bproj = 0.02 * jax.random.normal(ks[4], (1, in_dim), jnp.float32)
    n2g = jnp.ones((1, in_dim), jnp.float32)
    n2b = jnp.zeros((1, in_dim), jnp.float32)
    wfc1 = (0.02 * jax.random.normal(ks[5], (in_dim, hidden), jnp.float32)).astype(bf)
    bfc1 = jnp.zeros((1, hidden), jnp.float32)
    wfc2 = (0.02 * jax.random.normal(ks[6], (hidden, in_dim), jnp.float32)).astype(bf)
    bfc2 = jnp.zeros((1, in_dim), jnp.float32)
    return [n1g, n1b, wq, wk, wv, wproj, bproj, n2g, n2b, wfc1, bfc1, wfc2, bfc2]


# ----------------------------------------------------------------------------
# Main
# ----------------------------------------------------------------------------
if __name__ == "__main__":
    # DownsampleToken(in_channels=16, kernel_size=3, stride=2, padding=1,
    #                 method='transformer', num_heads=1, mlp_ratio=1)
    B = 2
    in_channels = 16
    H = W = 16
    kernel_size, stride, padding = 3, 2, 1
    N = H * W + 1                     # 257 tokens incl. cls token
    dim = in_channels * kernel_size * kernel_size   # 144

    key = jax.random.PRNGKey(0)
    kx, kp = jax.random.split(key)
    x = jax.random.normal(kx, (B, N, in_channels), jnp.float32)
    params = make_token_transformer_params(kp, dim, in_channels, mlp_ratio=1.0)

    fwd = jax.jit(functools.partial(
        downsample_token_forward, in_channels=in_channels,
        kernel_size=kernel_size, stride=stride, padding=padding))

    out, _prev = fwd(x, params)
    out = jax.block_until_ready(out)

    L = ((H + 2 * padding - kernel_size) // stride + 1) ** 2    # 64
    assert out.shape == (B, L + 1, in_channels), out.shape

    ref = downsample_token_reference(x, params, in_channels,
                                     kernel_size, stride, padding)
    err = float(jnp.max(jnp.abs(out - ref)))
    assert err < 2e-2, f"max abs err {err}"

    print("KERNEL_OK")
</pallas_src>

<mosaic_0001>
module attributes {stable_mosaic.version = 11 : i64} {
  func.func @token_transformer_kernel(%arg0: i32, %arg1: memref<1x72x144xbf16, #tpu.memory_space<vmem>>, %arg2: memref<1x144xf32, #tpu.memory_space<vmem>>, %arg3: memref<1x144xf32, #tpu.memory_space<vmem>>, %arg4: memref<144x128xbf16, #tpu.memory_space<vmem>>, %arg5: memref<144x128xbf16, #tpu.memory_space<vmem>>, %arg6: memref<144x128xbf16, #tpu.memory_space<vmem>>, %arg7: memref<128x128xbf16, #tpu.memory_space<vmem>>, %arg8: memref<1x128xf32, #tpu.memory_space<vmem>>, %arg9: memref<1x128xf32, #tpu.memory_space<vmem>>, %arg10: memref<1x128xf32, #tpu.memory_space<vmem>>, %arg11: memref<128x128xbf16, #tpu.memory_space<vmem>>, %arg12: memref<1x128xf32, #tpu.memory_space<vmem>>, %arg13: memref<128x128xbf16, #tpu.memory_space<vmem>>, %arg14: memref<1x128xf32, #tpu.memory_space<vmem>>, %arg15: memref<1x72x128xbf16, #tpu.memory_space<vmem>>) attributes {dimension_semantics = [#tpu.dimension_semantics<parallel>], iteration_bounds = array<i64: 2>, scalar_prefetch = 0 : i64, scratch_operands = 0 : i64, tpu.core_type = #tpu.core_type<tc>, window_params = [{transform_indices = @transform_0, window_bounds = array<i64: 1, 72, 144>}, {pipeline_mode = #tpu.pipeline_mode<synchronous>, transform_indices = @transform_1, window_bounds = array<i64: 1, 144>}, {pipeline_mode = #tpu.pipeline_mode<synchronous>, transform_indices = @transform_2, window_bounds = array<i64: 1, 144>}, {pipeline_mode = #tpu.pipeline_mode<synchronous>, transform_indices = @transform_3, window_bounds = array<i64: 144, 128>}, {pipeline_mode = #tpu.pipeline_mode<synchronous>, transform_indices = @transform_4, window_bounds = array<i64: 144, 128>}, {pipeline_mode = #tpu.pipeline_mode<synchronous>, transform_indices = @transform_5, window_bounds = array<i64: 144, 128>}, {pipeline_mode = #tpu.pipeline_mode<synchronous>, transform_indices = @transform_6, window_bounds = array<i64: 128, 128>}, {pipeline_mode = #tpu.pipeline_mode<synchronous>, transform_indices = @transform_7, window_bounds = array<i64: 1, 128>}, {pipeline_mode = #tpu.pipeline_mode<synchronous>, transform_indices = @transform_8, window_bounds = array<i64: 1, 128>}, {pipeline_mode = #tpu.pipeline_mode<synchronous>, transform_indices = @transform_9, window_bounds = array<i64: 1, 128>}, {pipeline_mode = #tpu.pipeline_mode<synchronous>, transform_indices = @transform_10, window_bounds = array<i64: 128, 128>}, {pipeline_mode = #tpu.pipeline_mode<synchronous>, transform_indices = @transform_11, window_bounds = array<i64: 1, 128>}, {pipeline_mode = #tpu.pipeline_mode<synchronous>, transform_indices = @transform_12, window_bounds = array<i64: 128, 128>}, {pipeline_mode = #tpu.pipeline_mode<synchronous>, transform_indices = @transform_13, window_bounds = array<i64: 1, 128>}, {transform_indices = @transform_14, window_bounds = array<i64: 1, 72, 128>}]} {
    %c0 = arith.constant 0 : index
    %c0_0 = arith.constant 0 : index
    %c0_1 = arith.constant 0 : index
    %0 = vector.load %arg1[%c0, %c0_0, %c0_1] : memref<1x72x144xbf16, #tpu.memory_space<vmem>>, vector<1x72x144xbf16>
    %1 = arith.extf %0 : vector<1x72x144xbf16> to vector<1x72x144xf32>
    %2 = vector.shape_cast %1 : vector<1x72x144xf32> to vector<72x144xf32>
    %cst = arith.constant dense<0.000000e+00> : vector<72xf32>
    %3 = vector.multi_reduction <add>, %2, %cst [1] : vector<72x144xf32> to vector<72xf32>
    %4 = vector.shape_cast %3 : vector<72xf32> to vector<72x1xf32>
    %cst_2 = arith.constant 1.440000e+02 : f32
    %5 = vector.broadcast %cst_2 : f32 to vector<72x1xf32>
    %6 = arith.divf %4, %5 : vector<72x1xf32>
    %7 = vector.broadcast %6 : vector<72x1xf32> to vector<72x144xf32>
    %8 = arith.subf %2, %7 : vector<72x144xf32>
    %9 = arith.mulf %8, %8 : vector<72x144xf32>
    %cst_3 = arith.constant dense<0.000000e+00> : vector<72xf32>
    %10 = vector.multi_reduction <add>, %9, %cst_3 [1] : vector<72x144xf32> to vector<72xf32>
    %11 = vector.shape_cast %10 : vector<72xf32> to vector<72x1xf32>
    %cst_4 = arith.constant 1.440000e+02 : f32
    %12 = vector.broadcast %cst_4 : f32 to vector<72x1xf32>
    %13 = arith.divf %11, %12 : vector<72x1xf32>
    %14 = vector.broadcast %6 : vector<72x1xf32> to vector<72x144xf32>
    %15 = arith.subf %2, %14 : vector<72x144xf32>
    %cst_5 = arith.constant 9.99999974E-6 : f32
    %16 = vector.broadcast %cst_5 : f32 to vector<72x1xf32>
    %17 = arith.addf %13, %16 : vector<72x1xf32>
    %18 = math.rsqrt %17 : vector<72x1xf32>
    %19 = vector.broadcast %18 : vector<72x1xf32> to vector<72x144xf32>
    %20 = arith.mulf %15, %19 : vector<72x144xf32>
    %c0_6 = arith.constant 0 : index
    %c0_7 = arith.constant 0 : index
    %21 = vector.load %arg2[%c0_6, %c0_7] : memref<1x144xf32, #tpu.memory_space<vmem>>, vector<1x144xf32>
    %22 = vector.broadcast %21 : vector<1x144xf32> to vector<72x144xf32>
    %23 = arith.mulf %20, %22 : vector<72x144xf32>
    %c0_8 = arith.constant 0 : index
    %c0_9 = arith.constant 0 : index
    %24 = vector.load %arg3[%c0_8, %c0_9] : memref<1x144xf32, #tpu.memory_space<vmem>>, vector<1x144xf32>
    %25 = vector.broadcast %24 : vector<1x144xf32> to vector<72x144xf32>
    %26 = arith.addf %23, %25 : vector<72x144xf32>
    %27 = arith.truncf %26 : vector<72x144xf32> to vector<72x144xbf16>
    %c0_10 = arith.constant 0 : index
    %c0_11 = arith.constant 0 : index
    %28 = vector.load %arg4[%c0_10, %c0_11] : memref<144x128xbf16, #tpu.memory_space<vmem>>, vector<144x128xbf16>
    %cst_12 = arith.constant dense<0.000000e+00> : vector<72x128xf32>
    %29 = tpu.matmul %27, %28, %cst_12 {dimension_numbers = #tpu.dot_dimension_numbers<[1], [0], [0], [1], [0, 0, 1, 1], [], []>} : vector<72x144xbf16>, vector<144x128xbf16>, vector<72x128xf32> -> vector<72x128xf32>
    %c0_13 = arith.constant 0 : index
    %c0_14 = arith.constant 0 : index
    %30 = vector.load %arg5[%c0_13, %c0_14] : memref<144x128xbf16, #tpu.memory_space<vmem>>, vector<144x128xbf16>
    %cst_15 = arith.constant dense<0.000000e+00> : vector<72x128xf32>
    %31 = tpu.matmul %27, %30, %cst_15 {dimension_numbers = #tpu.dot_dimension_numbers<[1], [0], [0], [1], [0, 0, 1, 1], [], []>} : vector<72x144xbf16>, vector<144x128xbf16>, vector<72x128xf32> -> vector<72x128xf32>
    %c0_16 = arith.constant 0 : index
    %c0_17 = arith.constant 0 : index
    %32 = vector.load %arg6[%c0_16, %c0_17] : memref<144x128xbf16, #tpu.memory_space<vmem>>, vector<144x128xbf16>
    %cst_18 = arith.constant dense<0.000000e+00> : vector<72x128xf32>
    %33 = tpu.matmul %27, %32, %cst_18 {dimension_numbers = #tpu.dot_dimension_numbers<[1], [0], [0], [1], [0, 0, 1, 1], [], []>} : vector<72x144xbf16>, vector<144x128xbf16>, vector<72x128xf32> -> vector<72x128xf32>
    %34 = vector.shape_cast %29 : vector<72x128xf32> to vector<1x72x128xf32>
    %35 = arith.truncf %34 : vector<1x72x128xf32> to vector<1x72x128xbf16>
    %36 = vector.shape_cast %31 : vector<72x128xf32> to vector<1x72x128xf32>
    %37 = arith.truncf %36 : vector<1x72x128xf32> to vector<1x72x128xbf16>
    %38 = vector.shape_cast %33 : vector<72x128xf32> to vector<1x72x128xf32>
    %39 = arith.truncf %38 : vector<1x72x128xf32> to vector<1x72x128xbf16>
    "tpu.trace_start"() <{level = 10 : i32, message = "bqd,bkd->bqk"}> : () -> ()
    %cst_19 = arith.constant dense<0.000000e+00> : vector<1x72x72xf32>
    %40 = tpu.matmul %35, %37, %cst_19 {dimension_numbers = #tpu.dot_dimension_numbers<[2], [2], [1], [1], [0, 0, 0, 1, 1, 1], [0], [0]>} : vector<1x72x128xbf16>, vector<1x72x128xbf16>, vector<1x72x72xf32> -> vector<1x72x72xf32>
    "tpu.trace_stop"() : () -> ()
    %41 = tpu.iota {dimensions = array<i32: 2>} : vector<1x1x72xi32>
    %c65_i32 = arith.constant 65 : i32
    %42 = vector.broadcast %c65_i32 : i32 to vector<1x1x72xi32>
    %43 = arith.cmpi slt, %41, %42 : vector<1x1x72xi32>
    %cst_20 = arith.constant -1.000000e+30 : f32
    %44 = vector.shape_cast %43 : vector<1x1x72xi1> to vector<1x1x72xi1>
    %45 = vector.broadcast %44 : vector<1x1x72xi1> to vector<1x72x72xi1>
    %46 = vector.broadcast %cst_20 : f32 to vector<1x72x72xf32>
    %47 = arith.select %45, %40, %46 : vector<1x72x72xi1>, vector<1x72x72xf32>
    %cst_21 = arith.constant dense<0xFF800000> : vector<1x72xf32>
    %48 = vector.multi_reduction <maximumf>, %47, %cst_21 [2] : vector<1x72x72xf32> to vector<1x72xf32>
    %49 = vector.shape_cast %48 : vector<1x72xf32> to vector<1x72x1xf32>
    %50 = vector.broadcast %49 : vector<1x72x1xf32> to vector<1x72x72xf32>
    %51 = arith.subf %47, %50 : vector<1x72x72xf32>
    %52 = math.exp %51 : vector<1x72x72xf32>
    %cst_22 = arith.constant dense<0.000000e+00> : vector<1x72xf32>
    %53 = vector.multi_reduction <add>, %52, %cst_22 [2] : vector<1x72x72xf32> to vector<1x72xf32>
    %54 = vector.shape_cast %53 : vector<1x72xf32> to vector<1x72x1xf32>
    %55 = tpu.reciprocal %54 {approx = true} : vector<1x72x1xf32> -> vector<1x72x1xf32>
    %56 = vector.broadcast %55 : vector<1x72x1xf32> to vector<1x72x72xf32>
    %57 = arith.mulf %52, %56 : vector<1x72x72xf32>
    %58 = arith.truncf %57 : vector<1x72x72xf32> to vector<1x72x72xbf16>
    "tpu.trace_start"() <{level = 10 : i32, message = "bqk,bkd->bqd"}> : () -> ()
    %cst_23 = arith.constant dense<0.000000e+00> : vector<1x72x128xf32>
    %59 = tpu.matmul %58, %39, %cst_23 {dimension_numbers = #tpu.dot_dimension_numbers<[2], [1], [1], [2], [0, 0, 0, 1, 1, 2], [0], [0]>} : vector<1x72x72xbf16>, vector<1x72x128xbf16>, vector<1x72x128xf32> -> vector<1x72x128xf32>
    "tpu.trace_stop"() : () -> ()
    %60 = vector.shape_cast %59 : vector<1x72x128xf32> to vector<72x128xf32>
    %61 = arith.truncf %60 : vector<72x128xf32> to vector<72x128xbf16>
    %c0_24 = arith.constant 0 : index
    %c0_25 = arith.constant 0 : index
    %62 = vector.load %arg7[%c0_24, %c0_25] : memref<128x128xbf16, #tpu.memory_space<vmem>>, vector<128x128xbf16>
    %cst_26 = arith.constant dense<0.000000e+00> : vector<72x128xf32>
    %63 = tpu.matmul %61, %62, %cst_26 {dimension_numbers = #tpu.dot_dimension_numbers<[1], [0], [0], [1], [0, 0, 1, 1], [], []>} : vector<72x128xbf16>, vector<128x128xbf16>, vector<72x128xf32> -> vector<72x128xf32>
    %c0_27 = arith.constant 0 : index
    %c0_28 = arith.constant 0 : index
    %64 = vector.load %arg8[%c0_27, %c0_28] : memref<1x128xf32, #tpu.memory_space<vmem>>, vector<1x128xf32>
    %65 = vector.broadcast %64 : vector<1x128xf32> to vector<72x128xf32>
    %66 = arith.addf %63, %65 : vector<72x128xf32>
    %67 = arith.addf %33, %66 : vector<72x128xf32>
    %cst_29 = arith.constant dense<0.000000e+00> : vector<72xf32>
    %68 = vector.multi_reduction <add>, %67, %cst_29 [1] : vector<72x128xf32> to vector<72xf32>
    %69 = vector.shape_cast %68 : vector<72xf32> to vector<72x1xf32>
    %cst_30 = arith.constant 6.250000e-02 : f32
    %70 = vector.broadcast %cst_30 : f32 to vector<72x1xf32>
    %71 = arith.mulf %69, %70 : vector<72x1xf32>
    %72 = arith.mulf %67, %67 : vector<72x128xf32>
    %cst_31 = arith.constant dense<0.000000e+00> : vector<72xf32>
    %73 = vector.multi_reduction <add>, %72, %cst_31 [1] : vector<72x128xf32> to vector<72xf32>
    %74 = vector.shape_cast %73 : vector<72xf32> to vector<72x1xf32>
    %cst_32 = arith.constant 6.250000e-02 : f32
    %75 = vector.broadcast %cst_32 : f32 to vector<72x1xf32>
    %76 = arith.mulf %74, %75 : vector<72x1xf32>
    %77 = arith.mulf %71, %71 : vector<72x1xf32>
    %78 = arith.subf %76, %77 : vector<72x1xf32>
    %79 = vector.broadcast %71 : vector<72x1xf32> to vector<72x128xf32>
    %80 = arith.subf %67, %79 : vector<72x128xf32>
    %cst_33 = arith.constant 9.99999974E-6 : f32
    %81 = vector.broadcast %cst_33 : f32 to vector<72x1xf32>
    %82 = arith.addf %78, %81 : vector<72x1xf32>
    %83 = math.rsqrt %82 : vector<72x1xf32>
    %84 = vector.broadcast %83 : vector<72x1xf32> to vector<72x128xf32>
    %85 = arith.mulf %80, %84 : vector<72x128xf32>
    %c0_34 = arith.constant 0 : index
    %c0_35 = arith.constant 0 : index
    %86 = vector.load %arg9[%c0_34, %c0_35] : memref<1x128xf32, #tpu.memory_space<vmem>>, vector<1x128xf32>
    %87 = vector.broadcast %86 : vector<1x128xf32> to vector<72x128xf32>
    %88 = arith.mulf %85, %87 : vector<72x128xf32>
    %c0_36 = arith.constant 0 : index
    %c0_37 = arith.constant 0 : index
    %89 = vector.load %arg10[%c0_36, %c0_37] : memref<1x128xf32, #tpu.memory_space<vmem>>, vector<1x128xf32>
    %90 = vector.broadcast %89 : vector<1x128xf32> to vector<72x128xf32>
    %91 = arith.addf %88, %90 : vector<72x128xf32>
    %92 = arith.truncf %91 : vector<72x128xf32> to vector<72x128xbf16>
    %c0_38 = arith.constant 0 : index
    %c0_39 = arith.constant 0 : index
    %93 = vector.load %arg11[%c0_38, %c0_39] : memref<128x128xbf16, #tpu.memory_space<vmem>>, vector<128x128xbf16>
    %cst_40 = arith.constant dense<0.000000e+00> : vector<72x128xf32>
    %94 = tpu.matmul %92, %93, %cst_40 {dimension_numbers = #tpu.dot_dimension_numbers<[1], [0], [0], [1], [0, 0, 1, 1], [], []>} : vector<72x128xbf16>, vector<128x128xbf16>, vector<72x128xf32> -> vector<72x128xf32>
    %c0_41 = arith.constant 0 : index
    %c0_42 = arith.constant 0 : index
    %95 = vector.load %arg12[%c0_41, %c0_42] : memref<1x128xf32, #tpu.memory_space<vmem>>, vector<1x128xf32>
    %96 = vector.broadcast %95 : vector<1x128xf32> to vector<72x128xf32>
    %97 = arith.addf %94, %96 : vector<72x128xf32>
    %cst_43 = arith.constant 5.000000e-01 : f32
    %98 = vector.broadcast %cst_43 : f32 to vector<72x128xf32>
    %99 = arith.mulf %98, %97 : vector<72x128xf32>
    %cst_44 = arith.constant 4.471500e-02 : f32
    %100 = vector.broadcast %cst_44 : f32 to vector<72x128xf32>
    %101 = arith.mulf %100, %97 : vector<72x128xf32>
    %102 = arith.mulf %101, %97 : vector<72x128xf32>
    %103 = arith.mulf %102, %97 : vector<72x128xf32>
    %104 = arith.addf %97, %103 : vector<72x128xf32>
    %cst_45 = arith.constant 0.797884583 : f32
    %105 = vector.broadcast %cst_45 : f32 to vector<72x128xf32>
    %106 = arith.mulf %105, %104 : vector<72x128xf32>
    %107 = math.tanh %106 : vector<72x128xf32>
    %cst_46 = arith.constant 1.000000e+00 : f32
    %108 = vector.broadcast %cst_46 : f32 to vector<72x128xf32>
    %109 = arith.addf %108, %107 : vector<72x128xf32>
    %110 = arith.mulf %99, %109 : vector<72x128xf32>
    %111 = arith.truncf %110 : vector<72x128xf32> to vector<72x128xbf16>
    %c0_47 = arith.constant 0 : index
    %c0_48 = arith.constant 0 : index
    %112 = vector.load %arg13[%c0_47, %c0_48] : memref<128x128xbf16, #tpu.memory_space<vmem>>, vector<128x128xbf16>
    %cst_49 = arith.constant dense<0.000000e+00> : vector<72x128xf32>
    %113 = tpu.matmul %111, %112, %cst_49 {dimension_numbers = #tpu.dot_dimension_numbers<[1], [0], [0], [1], [0, 0, 1, 1], [], []>} : vector<72x128xbf16>, vector<128x128xbf16>, vector<72x128xf32> -> vector<72x128xf32>
    %c0_50 = arith.constant 0 : index
    %c0_51 = arith.constant 0 : index
    %114 = vector.load %arg14[%c0_50, %c0_51] : memref<1x128xf32, #tpu.memory_space<vmem>>, vector<1x128xf32>
    %115 = vector.broadcast %114 : vector<1x128xf32> to vector<72x128xf32>
    %116 = arith.addf %113, %115 : vector<72x128xf32>
    %117 = arith.addf %67, %116 : vector<72x128xf32>
    %118 = vector.shape_cast %117 : vector<72x128xf32> to vector<1x72x128xf32>
    %119 = arith.truncf %118 : vector<1x72x128xf32> to vector<1x72x128xbf16>
    %c0_52 = arith.constant 0 : index
    %c0_53 = arith.constant 0 : index
    %c0_54 = arith.constant 0 : index
    %120 = vector.load %arg15[%c0_52, %c0_53, %c0_54] : memref<1x72x128xbf16, #tpu.memory_space<vmem>>, vector<1x72x128xbf16>
    tpu.vector_store %arg15[%c0_52, %c0_53, %c0_54], %119 {strides = array<i32>} : memref<1x72x128xbf16, #tpu.memory_space<vmem>>, vector<1x72x128xbf16>,
    return
  }
  func.func @transform_0(%arg0: i32) -> (i32, i32, i32) {
    %c0_i32 = arith.constant 0 : i32
    %c0_i32_0 = arith.constant 0 : i32
    %c0_i32_1 = arith.constant 0 : i32
    return %arg0, %c0_i32, %c0_i32_0 : i32, i32, i32
  }
  func.func @transform_1(%arg0: i32) -> (i32, i32) {
    %c0_i32 = arith.constant 0 : i32
    %c0_i32_0 = arith.constant 0 : i32
    %c0_i32_1 = arith.constant 0 : i32
    return %c0_i32, %c0_i32_0 : i32, i32
  }
  func.func @transform_2(%arg0: i32) -> (i32, i32) {
    %c0_i32 = arith.constant 0 : i32
    %c0_i32_0 = arith.constant 0 : i32
    %c0_i32_1 = arith.constant 0 : i32
    return %c0_i32, %c0_i32_0 : i32, i32
  }
  func.func @transform_3(%arg0: i32) -> (i32, i32) {
    %c0_i32 = arith.constant 0 : i32
    %c0_i32_0 = arith.constant 0 : i32
    %c0_i32_1 = arith.constant 0 : i32
    return %c0_i32, %c0_i32_0 : i32, i32
  }
  func.func @transform_4(%arg0: i32) -> (i32, i32) {
    %c0_i32 = arith.constant 0 : i32
    %c0_i32_0 = arith.constant 0 : i32
    %c0_i32_1 = arith.constant 0 : i32
    return %c0_i32, %c0_i32_0 : i32, i32
  }
  func.func @transform_5(%arg0: i32) -> (i32, i32) {
    %c0_i32 = arith.constant 0 : i32
    %c0_i32_0 = arith.constant 0 : i32
    %c0_i32_1 = arith.constant 0 : i32
    return %c0_i32, %c0_i32_0 : i32, i32
  }
  func.func @transform_6(%arg0: i32) -> (i32, i32) {
    %c0_i32 = arith.constant 0 : i32
    %c0_i32_0 = arith.constant 0 : i32
    %c0_i32_1 = arith.constant 0 : i32
    return %c0_i32, %c0_i32_0 : i32, i32
  }
  func.func @transform_7(%arg0: i32) -> (i32, i32) {
    %c0_i32 = arith.constant 0 : i32
    %c0_i32_0 = arith.constant 0 : i32
    %c0_i32_1 = arith.constant 0 : i32
    return %c0_i32, %c0_i32_0 : i32, i32
  }
  func.func @transform_8(%arg0: i32) -> (i32, i32) {
    %c0_i32 = arith.constant 0 : i32
    %c0_i32_0 = arith.constant 0 : i32
    %c0_i32_1 = arith.constant 0 : i32
    return %c0_i32, %c0_i32_0 : i32, i32
  }
  func.func @transform_9(%arg0: i32) -> (i32, i32) {
    %c0_i32 = arith.constant 0 : i32
    %c0_i32_0 = arith.constant 0 : i32
    %c0_i32_1 = arith.constant 0 : i32
    return %c0_i32, %c0_i32_0 : i32, i32
  }
  func.func @transform_10(%arg0: i32) -> (i32, i32) {
    %c0_i32 = arith.constant 0 : i32
    %c0_i32_0 = arith.constant 0 : i32
    %c0_i32_1 = arith.constant 0 : i32
    return %c0_i32, %c0_i32_0 : i32, i32
  }
  func.func @transform_11(%arg0: i32) -> (i32, i32) {
    %c0_i32 = arith.constant 0 : i32
    %c0_i32_0 = arith.constant 0 : i32
    %c0_i32_1 = arith.constant 0 : i32
    return %c0_i32, %c0_i32_0 : i32, i32
  }
  func.func @transform_12(%arg0: i32) -> (i32, i32) {
    %c0_i32 = arith.constant 0 : i32
    %c0_i32_0 = arith.constant 0 : i32
    %c0_i32_1 = arith.constant 0 : i32
    return %c0_i32, %c0_i32_0 : i32, i32
  }
  func.func @transform_13(%arg0: i32) -> (i32, i32) {
    %c0_i32 = arith.constant 0 : i32
    %c0_i32_0 = arith.constant 0 : i32
    %c0_i32_1 = arith.constant 0 : i32
    return %c0_i32, %c0_i32_0 : i32, i32
  }
  func.func @transform_14(%arg0: i32) -> (i32, i32, i32) {
    %c0_i32 = arith.constant 0 : i32
    %c0_i32_0 = arith.constant 0 : i32
    %c0_i32_1 = arith.constant 0 : i32
    return %arg0, %c0_i32, %c0_i32_0 : i32, i32, i32
  }
}

</mosaic_0001>

<llo_original>
// kernel: downsample_token_forward.1
$region0: #{downsample_token_forward.1}
  #allocation0 [shape = 'u32[]', space=smem, size = 0x4, offset = 0x4, fixed_abs, tag = 'smem constant byte address 0x4 - core index']
  #allocation1 [shape = 'u32[144,128]{1,0:T(1,128)}', space=vmem, size = 0x12000, scoped, tag = 'internal scratch']
  %s0 = inlined_call_operand.vmem [shape: bf16[2,72,144], index: 0, kind: input, shape index: {}]
  %s1 = inlined_call_operand.vmem [shape: f32[1,144], index: 1, kind: input, shape index: {}]
  %s2 = inlined_call_operand.vmem [shape: f32[1,144], index: 2, kind: input, shape index: {}]
  %s3 = inlined_call_operand.vmem [shape: bf16[144,128], index: 3, kind: input, shape index: {}]
  %s4 = inlined_call_operand.vmem [shape: bf16[144,128], index: 4, kind: input, shape index: {}]
  %s5 = inlined_call_operand.vmem [shape: bf16[144,128], index: 5, kind: input, shape index: {}]
  %s6 = inlined_call_operand.vmem [shape: bf16[128,128], index: 6, kind: input, shape index: {}]
  %s7 = inlined_call_operand.vmem [shape: f32[1,128], index: 7, kind: input, shape index: {}]
  %s8 = inlined_call_operand.vmem [shape: f32[1,128], index: 8, kind: input, shape index: {}]
  %s9 = inlined_call_operand.vmem [shape: f32[1,128], index: 9, kind: input, shape index: {}]
  %s10 = inlined_call_operand.vmem [shape: bf16[128,128], index: 10, kind: input, shape index: {}]
  %s11 = inlined_call_operand.vmem [shape: f32[1,128], index: 11, kind: input, shape index: {}]
  %s12 = inlined_call_operand.vmem [shape: bf16[128,128], index: 12, kind: input, shape index: {}]
  %s13 = inlined_call_operand.vmem [shape: f32[1,128], index: 13, kind: input, shape index: {}]
  %s14 = inlined_call_operand.vmem [shape: bf16[2,72,128], index: 14, kind: output, shape index: {}]
  %s15 = sld [smem:[#allocation0]]
  $region89: #{downsample_token_forward.1} parent=0
    _
  %s17 = ssub.s32 1, %s15
  %s18 = scalar_select 0, %s17, %s15
  loop: start=0, step=1, limit=4
  $region2: #{downsample_token_forward.1} parent=0 // loop_pre_header
    _
  $region3: #{downsample_token_forward.1} parent=0 // loop_header
    %s20 = sphi 0, %s24
    %p21 = scmp.ge.s32.totalorder %s20, 4
    %s30 = sphi 0, %s32
    %s33 = sphi 0, %s30
    %s34 = sphi 0, %s33
    %s50 = sphi 0, %s34
    %s54 = sphi 0, %s54
    %s56 = sphi 0, %s54
    %s57 = sphi 0, %s56
    %s71 = sphi 0, %s57
    %s75 = sphi 0, %s75
    %s77 = sphi 0, %s75
    %s78 = sphi 0, %s77
    %s92 = sphi 0, %s78
    %s96 = sphi 0, %s96
    %s98 = sphi 0, %s96
    %s99 = sphi 0, %s98
    %s113 = sphi 0, %s99
    %s117 = sphi 0, %s117
    %s119 = sphi 0, %s117
    %s120 = sphi 0, %s119
    %s134 = sphi 0, %s120
    %s138 = sphi 0, %s138
    %s140 = sphi 0, %s138
    %s141 = sphi 0, %s140
    %s155 = sphi 0, %s141
    %s159 = sphi 0, %s159
    %s161 = sphi 0, %s159
    %s162 = sphi 0, %s161
    %s176 = sphi 0, %s162
    %s180 = sphi 0, %s180
    %s182 = sphi 0, %s180
    %s183 = sphi 0, %s182
    %s197 = sphi 0, %s183
    %s201 = sphi 0, %s201
    %s203 = sphi 0, %s201
    %s204 = sphi 0, %s203
    %s218 = sphi 0, %s204
    %s222 = sphi 0, %s222
    %s224 = sphi 0, %s222
    %s225 = sphi 0, %s224
    %s239 = sphi 0, %s225
    %s243 = sphi 0, %s243
    %s245 = sphi 0, %s243
    %s246 = sphi 0, %s245
    %s260 = sphi 0, %s246
    %s264 = sphi 0, %s264
    %s266 = sphi 0, %s264
    %s267 = sphi 0, %s266
    %s281 = sphi 0, %s267
    %s285 = sphi 0, %s285
    %s287 = sphi 0, %s285
    %s288 = sphi 0, %s287
    %s302 = sphi 0, %s288
    %s306 = sphi 0, %s306
    %s308 = sphi 0, %s306
    %s309 = sphi 0, %s308
    %s323 = sphi 0, %s309
    %s329 = sphi 0, %s331
    %s332 = sphi 0, %s329
    %s333 = sphi 0, %s332
    %s349 = sphi 0, %s333
  $region4: #{downsample_token_forward.1} parent=0 // loop_header_branch
    %23 = sbr.rel (%p21) target = $region8
  $region5: #{downsample_token_forward.1} parent=0 // loop_body
    %s25 = ssub.s32 %s20, 1
    %s26 = ssub.s32 %s20, 2
    %s27 = sadd.s32 %s20, 1
    %s28 = ssub.s32 %s20, %s27
    %p29 = scmp.eq.s32.totalorder %s28, 0
    %s31 = sadd.s32 %s30, 1
    %s32 = scalar_select %p29, %s30, %s31
    %p35 = pneg %p29
    %p36 = scmp.eq.s32.totalorder %s20, 1
    %p37 = por %p35, %p36
    %p38 = scmp.ne.s32.totalorder %s30, %s33
    %p39 = scmp.eq.s32.totalorder %s20, 0
    %p40 = por %p38, %p39
    %p41 = scmp.ne.s32.totalorder %s30, %s33
    %p42 = scmp.eq.s32.totalorder %s25, 1
    %p43 = por %p41, %p42
    %p44 = scmp.ne.s32.totalorder %s33, %s34
    %p45 = scmp.eq.s32.totalorder %s25, 0
    %p46 = por %p44, %p45
    %p47 = scmp.ne.s32.totalorder %s33, %s34
    %p48 = scmp.eq.s32.totalorder %s26, 1
    %p49 = por %p47, %p48
    %p51 = scmp.ne.s32.totalorder %s34, %s50
    %p52 = scmp.eq.s32.totalorder %s26, 0
    %p53 = por %p51, %p52
    %s55 = sadd.s32 %s54, 1
    %p58 = scmp.eq.s32.totalorder %s20, 1
    %p59 = scmp.ne.s32.totalorder %s54, %s56
    %p60 = scmp.eq.s32.totalorder %s20, 0
    %p61 = por %p59, %p60
    %p62 = scmp.ne.s32.totalorder %s54, %s56
    %p63 = scmp.eq.s32.totalorder %s25, 1
    %p64 = por %p62, %p63
    %p65 = scmp.ne.s32.totalorder %s56, %s57
    %p66 = scmp.eq.s32.totalorder %s25, 0
    %p67 = por %p65, %p66
    %p68 = scmp.ne.s32.totalorder %s56, %s57
    %p69 = scmp.eq.s32.totalorder %s26, 1
    %p70 = por %p68, %p69
    %p72 = scmp.ne.s32.totalorder %s57, %s71
    %p73 = scmp.eq.s32.totalorder %s26, 0
    %p74 = por %p72, %p73
    %s76 = sadd.s32 %s75, 1
    %p79 = scmp.eq.s32.totalorder %s20, 1
    %p80 = scmp.ne.s32.totalorder %s75, %s77
    %p81 = scmp.eq.s32.totalorder %s20, 0
    %p82 = por %p80, %p81
    %p83 = scmp.ne.s32.totalorder %s75, %s77
    %p84 = scmp.eq.s32.totalorder %s25, 1
    %p85 = por %p83, %p84
    %p86 = scmp.ne.s32.totalorder %s77, %s78
    %p87 = scmp.eq.s32.totalorder %s25, 0
    %p88 = por %p86, %p87
    %p89 = scmp.ne.s32.totalorder %s77, %s78
    %p90 = scmp.eq.s32.totalorder %s26, 1
    %p91 = por %p89, %p90
    %p93 = scmp.ne.s32.totalorder %s78, %s92
    %p94 = scmp.eq.s32.totalorder %s26, 0
    %p95 = por %p93, %p94
    %s97 = sadd.s32 %s96, 1
    %p100 = scmp.eq.s32.totalorder %s20, 1
    %p101 = scmp.ne.s32.totalorder %s96, %s98
    %p102 = scmp.eq.s32.totalorder %s20, 0
    %p103 = por %p101, %p102
    %p104 = scmp.ne.s32.totalorder %s96, %s98
    %p105 = scmp.eq.s32.totalorder %s25, 1
    %p106 = por %p104, %p105
    %p107 = scmp.ne.s32.totalorder %s98, %s99
    %p108 = scmp.eq.s32.totalorder %s25, 0
    %p109 = por %p107, %p108
    %p110 = scmp.ne.s32.totalorder %s98, %s99
    %p111 = scmp.eq.s32.totalorder %s26, 1
    %p112 = por %p110, %p111
    %p114 = scmp.ne.s32.totalorder %s99, %s113
    %p115 = scmp.eq.s32.totalorder %s26, 0
    %p116 = por %p114, %p115
    %s118 = sadd.s32 %s117, 1
    %p121 = scmp.eq.s32.totalorder %s20, 1
    %p122 = scmp.ne.s32.totalorder %s117, %s119
    %p123 = scmp.eq.s32.totalorder %s20, 0
    %p124 = por %p122, %p123
    %p125 = scmp.ne.s32.totalorder %s117, %s119
    %p126 = scmp.eq.s32.totalorder %s25, 1
    %p127 = por %p125, %p126
    %p128 = scmp.ne.s32.totalorder %s119, %s120
    %p129 = scmp.eq.s32.totalorder %s25, 0
    %p130 = por %p128, %p129
    %p131 = scmp.ne.s32.totalorder %s119, %s120
    %p132 = scmp.eq.s32.totalorder %s26, 1
    %p133 = por %p131, %p132
    %p135 = scmp.ne.s32.totalorder %s120, %s134
    %p136 = scmp.eq.s32.totalorder %s26, 0
    %p137 = por %p135, %p136
    %s139 = sadd.s32 %s138, 1
    %p142 = scmp.eq.s32.totalorder %s20, 1
    %p143 = scmp.ne.s32.totalorder %s138, %s140
    %p144 = scmp.eq.s32.totalorder %s20, 0
    %p145 = por %p143, %p144
    %p146 = scmp.ne.s32.totalorder %s138, %s140
    %p147 = scmp.eq.s32.totalorder %s25, 1
    %p148 = por %p146, %p147
    %p149 = scmp.ne.s32.totalorder %s140, %s141
    %p150 = scmp.eq.s32.totalorder %s25, 0
    %p151 = por %p149, %p150
    %p152 = scmp.ne.s32.totalorder %s140, %s141
    %p153 = scmp.eq.s32.totalorder %s26, 1
    %p154 = por %p152, %p153
    %p156 = scmp.ne.s32.totalorder %s141, %s155
    %p157 = scmp.eq.s32.totalorder %s26, 0
    %p158 = por %p156, %p157
    %s160 = sadd.s32 %s159, 1
    %p163 = scmp.eq.s32.totalorder %s20, 1
    %p164 = scmp.ne.s32.totalorder %s159, %s161
    %p165 = scmp.eq.s32.totalorder %s20, 0
    %p166 = por %p164, %p165
    %p167 = scmp.ne.s32.totalorder %s159, %s161
    %p168 = scmp.eq.s32.totalorder %s25, 1
    %p169 = por %p167, %p168
    %p170 = scmp.ne.s32.totalorder %s161, %s162
    %p171 = scmp.eq.s32.totalorder %s25, 0
    %p172 = por %p170, %p171
    %p173 = scmp.ne.s32.totalorder %s161, %s162
    %p174 = scmp.eq.s32.totalorder %s26, 1
    %p175 = por %p173, %p174
    %p177 = scmp.ne.s32.totalorder %s162, %s176
    %p178 = scmp.eq.s32.totalorder %s26, 0
    %p179 = por %p177, %p178
    %s181 = sadd.s32 %s180, 1
    %p184 = scmp.eq.s32.totalorder %s20, 1
    %p185 = scmp.ne.s32.totalorder %s180, %s182
    %p186 = scmp.eq.s32.totalorder %s20, 0
    %p187 = por %p185, %p186
    %p188 = scmp.ne.s32.totalorder %s180, %s182
    %p189 = scmp.eq.s32.totalorder %s25, 1
    %p190 = por %p188, %p189
    %p191 = scmp.ne.s32.totalorder %s182, %s183
    %p192 = scmp.eq.s32.totalorder %s25, 0
    %p193 = por %p191, %p192
    %p194 = scmp.ne.s32.totalorder %s182, %s183
    %p195 = scmp.eq.s32.totalorder %s26, 1
    %p196 = por %p194, %p195
    %p198 = scmp.ne.s32.totalorder %s183, %s197
    %p199 = scmp.eq.s32.totalorder %s26, 0
    %p200 = por %p198, %p199
    %s202 = sadd.s32 %s201, 1
    %p205 = scmp.eq.s32.totalorder %s20, 1
    %p206 = scmp.ne.s32.totalorder %s201, %s203
    %p207 = scmp.eq.s32.totalorder %s20, 0
    %p208 = por %p206, %p207
    %p209 = scmp.ne.s32.totalorder %s201, %s203
    %p210 = scmp.eq.s32.totalorder %s25, 1
    %p211 = por %p209, %p210
    %p212 = scmp.ne.s32.totalorder %s203, %s204
    %p213 = scmp.eq.s32.totalorder %s25, 0
    %p214 = por %p212, %p213
    %p215 = scmp.ne.s32.totalorder %s203, %s204
    %p216 = scmp.eq.s32.totalorder %s26, 1
    %p217 = por %p215, %p216
    %p219 = scmp.ne.s32.totalorder %s204, %s218
    %p220 = scmp.eq.s32.totalorder %s26, 0
    %p221 = por %p219, %p220
    %s223 = sadd.s32 %s222, 1
    %p226 = scmp.eq.s32.totalorder %s20, 1
    %p227 = scmp.ne.s32.totalorder %s222, %s224
    %p228 = scmp.eq.s32.totalorder %s20, 0
    %p229 = por %p227, %p228
    %p230 = scmp.ne.s32.totalorder %s222, %s224
    %p231 = scmp.eq.s32.totalorder %s25, 1
    %p232 = por %p230, %p231
    %p233 = scmp.ne.s32.totalorder %s224, %s225
    %p234 = scmp.eq.s32.totalorder %s25, 0
    %p235 = por %p233, %p234
    %p236 = scmp.ne.s32.totalorder %s224, %s225
    %p237 = scmp.eq.s32.totalorder %s26, 1
    %p238 = por %p236, %p237
    %p240 = scmp.ne.s32.totalorder %s225, %s239
    %p241 = scmp.eq.s32.totalorder %s26, 0
    %p242 = por %p240, %p241
    %s244 = sadd.s32 %s243, 1
    %p247 = scmp.eq.s32.totalorder %s20, 1
    %p248 = scmp.ne.s32.totalorder %s243, %s245
    %p249 = scmp.eq.s32.totalorder %s20, 0
    %p250 = por %p248, %p249
    %p251 = scmp.ne.s32.totalorder %s243, %s245
    %p252 = scmp.eq.s32.totalorder %s25, 1
    %p253 = por %p251, %p252
    %p254 = scmp.ne.s32.totalorder %s245, %s246
    %p255 = scmp.eq.s32.totalorder %s25, 0
    %p256 = por %p254, %p255
    %p257 = scmp.ne.s32.totalorder %s245, %s246
    %p258 = scmp.eq.s32.totalorder %s26, 1
    %p259 = por %p257, %p258
    %p261 = scmp.ne.s32.totalorder %s246, %s260
    %p262 = scmp.eq.s32.totalorder %s26, 0
    %p263 = por %p261, %p262
    %s265 = sadd.s32 %s264, 1
    %p268 = scmp.eq.s32.totalorder %s20, 1
    %p269 = scmp.ne.s32.totalorder %s264, %s266
    %p270 = scmp.eq.s32.totalorder %s20, 0
    %p271 = por %p269, %p270
    %p272 = scmp.ne.s32.totalorder %s264, %s266
    %p273 = scmp.eq.s32.totalorder %s25, 1
    %p274 = por %p272, %p273
    %p275 = scmp.ne.s32.totalorder %s266, %s267
    %p276 = scmp.eq.s32.totalorder %s25, 0
    %p277 = por %p275, %p276
    %p278 = scmp.ne.s32.totalorder %s266, %s267
    %p279 = scmp.eq.s32.totalorder %s26, 1
    %p280 = por %p278, %p279
    %p282 = scmp.ne.s32.totalorder %s267, %s281
    %p283 = scmp.eq.s32.totalorder %s26, 0
    %p284 = por %p282, %p283
    %s286 = sadd.s32 %s285, 1
    %p289 = scmp.eq.s32.totalorder %s20, 1
    %p290 = scmp.ne.s32.totalorder %s285, %s287
    %p291 = scmp.eq.s32.totalorder %s20, 0
    %p292 = por %p290, %p291
    %p293 = scmp.ne.s32.totalorder %s285, %s287
    %p294 = scmp.eq.s32.totalorder %s25, 1
    %p295 = por %p293, %p294
    %p296 = scmp.ne.s32.totalorder %s287, %s288
    %p297 = scmp.eq.s32.totalorder %s25, 0
    %p298 = por %p296, %p297
    %p299 = scmp.ne.s32.totalorder %s287, %s288
    %p300 = scmp.eq.s32.totalorder %s26, 1
    %p301 = por %p299, %p300
    %p303 = scmp.ne.s32.totalorder %s288, %s302
    %p304 = scmp.eq.s32.totalorder %s26, 0
    %p305 = por %p303, %p304
    %s307 = sadd.s32 %s306, 1
    %p310 = scmp.eq.s32.totalorder %s20, 1
    %p311 = scmp.ne.s32.totalorder %s306, %s308
    %p312 = scmp.eq.s32.totalorder %s20, 0
    %p313 = por %p311, %p312
    %p314 = scmp.ne.s32.totalorder %s306, %s308
    %p315 = scmp.eq.s32.totalorder %s25, 1
    %p316 = por %p314, %p315
    %p317 = scmp.ne.s32.totalorder %s308, %s309
    %p318 = scmp.eq.s32.totalorder %s25, 0
    %p319 = por %p317, %p318
    %p320 = scmp.ne.s32.totalorder %s308, %s309
    %p321 = scmp.eq.s32.totalorder %s26, 1
    %p322 = por %p320, %p321
    %p324 = scmp.ne.s32.totalorder %s309, %s323
    %p325 = scmp.eq.s32.totalorder %s26, 0
    %p326 = por %p324, %p325
    %s327 = ssub.s32 %s20, %s27
    %p328 = scmp.eq.s32.totalorder %s327, 0
    %s330 = sadd.s32 %s329, 1
    %s331 = scalar_select %p328, %s329, %s330
    %p334 = pneg %p328
    %p335 = scmp.eq.s32.totalorder %s20, 1
    %p336 = por %p334, %p335
    %p337 = scmp.ne.s32.totalorder %s329, %s332
    %p338 = scmp.eq.s32.totalorder %s20, 0
    %p339 = por %p337, %p338
    %p340 = scmp.ne.s32.totalorder %s329, %s332
    %p341 = scmp.eq.s32.totalorder %s25, 1
    %p342 = por %p340, %p341
    %p343 = scmp.ne.s32.totalorder %s332, %s333
    %p344 = scmp.eq.s32.totalorder %s25, 0
    %p345 = por %p343, %p344
    %p346 = scmp.ne.s32.totalorder %s332, %s333
    %p347 = scmp.eq.s32.totalorder %s26, 1
    %p348 = por %p346, %p347
    %p350 = scmp.ne.s32.totalorder %s333, %s349
    %p351 = scmp.eq.s32.totalorder %s26, 0
    %p352 = por %p350, %p351
    %p353 = scmp.le.s32.totalorder 1, %s20
    %p354 = scmp.lt.s32.totalorder %s20, 3
    %p355 = pnand %p353, %p354
    %p356 = pneg %p355
    // Predicated region
    $region9: #{downsample_token_forward.1} parent=5 // pred_check
      _
    $region10: #{downsample_token_forward.1} parent=5 // pred_check_branch
      %358 = sbr.rel (%p355) target = $region12
    $region11: #{downsample_token_forward.1} parent=5 // pred_region
      %s359 = ssub.s32 %s20, 1
      // Predicated region
      $region13: #{downsample_token_forward.1} parent=11 // pred_check
        %p360 = pneg %p67
      $region14: #{downsample_token_forward.1} parent=11 // pred_check_branch
        %362 = sbr.rel (%p360) target = $region16
      $region15: #{downsample_token_forward.1} parent=11 // pred_region
        _
      $region16: #{downsample_token_forward.1} parent=11 // pred_fallthru
        _
      // Predicated region
      $region17: #{downsample_token_forward.1} parent=11 // pred_check
        %p363 = pneg %p88
      $region18: #{downsample_token_forward.1} parent=11 // pred_check_branch
        %365 = sbr.rel (%p363) target = $region20
      $region19: #{downsample_token_forward.1} parent=11 // pred_region
        _
      $region20: #{downsample_token_forward.1} parent=11 // pred_fallthru
        _
      // Predicated region
      $region21: #{downsample_token_forward.1} parent=11 // pred_check
        %p366 = pneg %p109
      $region22: #{downsample_token_forward.1} parent=11 // pred_check_branch
        %368 = sbr.rel (%p366) target = $region24
      $region23: #{downsample_token_forward.1} parent=11 // pred_region
        _
      $region24: #{downsample_token_forward.1} parent=11 // pred_fallthru
        _
      // Predicated region
      $region25: #{downsample_token_forward.1} parent=11 // pred_check
        %p369 = pneg %p130
      $region26: #{downsample_token_forward.1} parent=11 // pred_check_branch
        %371 = sbr.rel (%p369) target = $region28
      $region27: #{downsample_token_forward.1} parent=11 // pred_region
        _
      $region28: #{downsample_token_forward.1} parent=11 // pred_fallthru
        _
      // Predicated region
      $region29: #{downsample_token_forward.1} parent=11 // pred_check
        %p372 = pneg %p151
      $region30: #{downsample_token_forward.1} parent=11 // pred_check_branch
        %374 = sbr.rel (%p372) target = $region32
      $region31: #{downsample_token_forward.1} parent=11 // pred_region
        _
      $region32: #{downsample_token_forward.1} parent=11 // pred_fallthru
        _
      // Predicated region
      $region33: #{downsample_token_forward.1} parent=11 // pred_check
        %p375 = pneg %p172
      $region34: #{downsample_token_forward.1} parent=11 // pred_check_branch
        %377 = sbr.rel (%p375) target = $region36
      $region35: #{downsample_token_forward.1} parent=11 // pred_region
        _
      $region36: #{downsample_token_forward.1} parent=11 // pred_fallthru
        _
      // Predicated region
      $region37: #{downsample_token_forward.1} parent=11 // pred_check
        %p378 = pneg %p193
      $region38: #{downsample_token_forward.1} parent=11 // pred_check_branch
        %380 = sbr.rel (%p378) target = $region40
      $region39: #{downsample_token_forward.1} parent=11 // pred_region
        _
      $region40: #{downsample_token_forward.1} parent=11 // pred_fallthru
        _
      // Predicated region
      $region41: #{downsample_token_forward.1} parent=11 // pred_check
        %p381 = pneg %p214
      $region42: #{downsample_token_forward.1} parent=11 // pred_check_branch
        %383 = sbr.rel (%p381) target = $region44
      $region43: #{downsample_token_forward.1} parent=11 // pred_region
        _
      $region44: #{downsample_token_forward.1} parent=11 // pred_fallthru
        _
      // Predicated region
      $region45: #{downsample_token_forward.1} parent=11 // pred_check
        %p384 = pneg %p235
      $region46: #{downsample_token_forward.1} parent=11 // pred_check_branch
        %386 = sbr.rel (%p384) target = $region48
      $region47: #{downsample_token_forward.1} parent=11 // pred_region
        _
      $region48: #{downsample_token_forward.1} parent=11 // pred_fallthru
        _
      // Predicated region
      $region49: #{downsample_token_forward.1} parent=11 // pred_check
        %p387 = pneg %p256
      $region50: #{downsample_token_forward.1} parent=11 // pred_check_branch
        %389 = sbr.rel (%p387) target = $region52
      $region51: #{downsample_token_forward.1} parent=11 // pred_region
        _
      $region52: #{downsample_token_forward.1} parent=11 // pred_fallthru
        _
      // Predicated region
      $region53: #{downsample_token_forward.1} parent=11 // pred_check
        %p390 = pneg %p277
      $region54: #{downsample_token_forward.1} parent=11 // pred_check_branch
        %392 = sbr.rel (%p390) target = $region56
      $region55: #{downsample_token_forward.1} parent=11 // pred_region
        _
      $region56: #{downsample_token_forward.1} parent=11 // pred_fallthru
        _
      // Predicated region
      $region57: #{downsample_token_forward.1} parent=11 // pred_check
        %p393 = pneg %p298
      $region58: #{downsample_token_forward.1} parent=11 // pred_check_branch
        %395 = sbr.rel (%p393) target = $region60
      $region59: #{downsample_token_forward.1} parent=11 // pred_region
        _
      $region60: #{downsample_token_forward.1} parent=11 // pred_fallthru
        _
      // Predicated region
      $region61: #{downsample_token_forward.1} parent=11 // pred_check
        %p396 = pneg %p319
      $region62: #{downsample_token_forward.1} parent=11 // pred_check_branch
        %398 = sbr.rel (%p396) target = $region64
      $region63: #{downsample_token_forward.1} parent=11 // pred_region
        _
      $region64: #{downsample_token_forward.1} parent=11 // pred_fallthru
        _
    $region12: #{downsample_token_forward.1} parent=5 // pred_fallthru
      _
    %p399 = scmp.lt.s32.totalorder %s20, 2
    // Predicated region
    $region65: #{downsample_token_forward.1} parent=5 // pred_check
      %p400 = pneg %p399
    $region66: #{downsample_token_forward.1} parent=5 // pred_check_branch
      %402 = sbr.rel (%p400) target = $region68
    $region67: #{downsample_token_forward.1} parent=5 // pred_region
      // Predicated region
      $region69: #{downsample_token_forward.1} parent=67 // pred_check
        %p403 = pneg %p40
      $region70: #{downsample_token_forward.1} parent=67 // pred_check_branch
        %405 = sbr.rel (%p403) target = $region72
      $region71: #{downsample_token_forward.1} parent=67 // pred_region
        %p406 = scmp.lt.s32.totalorder %s20, 1
        %s407 = scalar_select %p406, %s20, 1
        %s408 = smul.addr %s407, 18
        %s409 = smul.addr %s408, 4
        %s410 = scalar_lea.vmem %s0, %s409
      $region72: #{downsample_token_forward.1} parent=67 // pred_fallthru
        _
    $region68: #{downsample_token_forward.1} parent=5 // pred_fallthru
      _
    %p411 = scmp.le.s32.totalorder 1, %s20
    %p412 = scmp.lt.s32.totalorder %s20, 3
    %p413 = pnand %p411, %p412
    %p414 = pneg %p413
    // Predicated region
    $region73: #{downsample_token_forward.1} parent=5 // pred_check
      _
    $region74: #{downsample_token_forward.1} parent=5 // pred_check_branch
      %416 = sbr.rel (%p413) target = $region76
    $region75: #{downsample_token_forward.1} parent=5 // pred_region
      %s417 = ssub.s32 %s20, 1
      %p418 = scmp.lt.s32.totalorder %s25, 1
      %s419 = scalar_select %p418, %s25, 1
      %s420 = smul.addr %s419, 18
      %s421 = smul.addr %s420, 4
      %s422 = scalar_lea.vmem %s0, %s421
      %p423 = pneg %p46
      %p424 = pneg %p43
      %p425 = pneg %p67
      %p426 = pneg %p64
      %p427 = pneg %p88
      %p428 = pneg %p85
      %p429 = pneg %p109
      %p430 = pneg %p106
      %p431 = pneg %p130
      %p432 = pneg %p127
      %p433 = pneg %p151
      %p434 = pneg %p148
      %p435 = pneg %p172
      %p436 = pneg %p169
      %p437 = pneg %p193
      %p438 = pneg %p190
      %p439 = pneg %p214
      %p440 = pneg %p211
      %p441 = pneg %p235
      %p442 = pneg %p232
      %p443 = pneg %p256
      %p444 = pneg %p253
      %p445 = pneg %p277
      %p446 = pneg %p274
      %p447 = pneg %p298
      %p448 = pneg %p295
      %p449 = pneg %p319
      %p450 = pneg %p316
      %p451 = pneg %p345
      %p452 = pneg %p342
      %p453 = scmp.lt.s32.totalorder %s25, 1
      %s454 = scalar_select %p453, %s25, 1
      %s455 = smul.addr %s454, 9
      %s456 = smul.addr %s455, 4
      %s457 = scalar_lea.vmem %s14, %s456
      %p458 = scmp.lt.s32.totalorder %s25, 1
      %s459 = scalar_select %p458, %s25, 1
      %s460 = smul.addr %s459, 18
      %s461 = smul.addr %s460, 4
      %s462 = scalar_lea.vmem %s0, %s461
      %p463 = scmp.lt.s32.totalorder %s25, 1
      %s464 = scalar_select %p463, %s25, 1
      %s465 = smul.addr %s464, 9
      %s466 = smul.addr %s465, 4
      %s467 = scalar_lea.vmem %s14, %s466
      %v469 = vld [vmem:[%s462] sm:$0xff]
      %v470 = vld [vmem:[%s462 + $0x8] sm:$0xff]
      %v471 = vld [vmem:[%s462 + $0x10] sm:$0xff]
      %v472 = vld [vmem:[%s462 + $0x18] sm:$0xff]
      %v473 = vld [vmem:[%s462 + $0x20] sm:$0xff]
      %v474 = vld [vmem:[%s462 + $0x28] sm:$0xff]
      %v475 = vld [vmem:[%s462 + $0x30] sm:$0xff]
      %v476 = vld [vmem:[%s462 + $0x38] sm:$0xff]
      %v477 = vld [vmem:[%s462 + $0x40] sm:$0xff]
      %v478 = vunpack.c.l.bf16 %v469
      %v479 = vunpack.c.h.bf16 %v469
      %v480 = vunpack.c.l.bf16 %v470
      %v481 = vunpack.c.h.bf16 %v470
      %v482 = vunpack.c.l.bf16 %v471
      %v483 = vunpack.c.h.bf16 %v471
      %v484 = vunpack.c.l.bf16 %v472
      %v485 = vunpack.c.h.bf16 %v472
      %v486 = vunpack.c.l.bf16 %v473
      %v487 = vunpack.c.h.bf16 %v473
      %v488 = vunpack.c.l.bf16 %v474
      %v489 = vunpack.c.h.bf16 %v474
      %v490 = vunpack.c.l.bf16 %v475
      %v491 = vunpack.c.h.bf16 %v475
      %v492 = vunpack.c.l.bf16 %v476
      %v493 = vunpack.c.h.bf16 %v476
      %v494 = vunpack.c.l.bf16 %v477
      %v495 = vunpack.c.h.bf16 %v477
      %vm496 = vcmask 130048
      %v497 = vsel %vm496, %v479, 0.0
      %v498 = vadd.f32 %v478, %v497
      %499 = vadd.xlane.f32.xlu0 %v498
      %v500 = vpop.xlane.xlu0 %499
      %v501 = vsel %vm496, %v481, 0.0
      %v502 = vadd.f32 %v480, %v501
      %503 = vadd.xlane.f32.xlu0 %v502
      %v504 = vpop.xlane.xlu0 %503
      %v505 = vsel %vm496, %v483, 0.0
      %v506 = vadd.f32 %v482, %v505
      %507 = vadd.xlane.f32.xlu0 %v506
      %v508 = vpop.xlane.xlu0 %507
      %v509 = vsel %vm496, %v485, 0.0
      %v510 = vadd.f32 %v484, %v509
      %511 = vadd.xlane.f32.xlu0 %v510
      %v512 = vpop.xlane.xlu0 %511
      %v513 = vsel %vm496, %v487, 0.0
      %v514 = vadd.f32 %v486, %v513
      %515 = vadd.xlane.f32.xlu0 %v514
      %v516 = vpop.xlane.xlu0 %515
      %v517 = vsel %vm496, %v489, 0.0
      %v518 = vadd.f32 %v488, %v517
      %519 = vadd.xlane.f32.xlu0 %v518
      %v520 = vpop.xlane.xlu0 %519
      %v521 = vsel %vm496, %v491, 0.0
      %v522 = vadd.f32 %v490, %v521
      %523 = vadd.xlane.f32.xlu0 %v522
      %v524 = vpop.xlane.xlu0 %523
      %v525 = vsel %vm496, %v493, 0.0
      %v526 = vadd.f32 %v492, %v525
      %527 = vadd.xlane.f32.xlu0 %v526
      %v528 = vpop.xlane.xlu0 %527
      %v529 = vsel %vm496, %v495, 0.0
      %v530 = vadd.f32 %v494, %v529
      %531 = vadd.xlane.f32.xlu0 %v530
      %v532 = vpop.xlane.xlu0 %531
      %v533 = vrcp.pop 144.0
      %v534 = vmul.f32 %v500, %v533
      %v535 = vmul.f32 %v504, %v533
      %v536 = vmul.f32 %v508, %v533
      %v537 = vmul.f32 %v512, %v533
      %v538 = vmul.f32 %v516, %v533
      %v539 = vmul.f32 %v520, %v533
      %v540 = vmul.f32 %v524, %v533
      %v541 = vmul.f32 %v528, %v533
      %v542 = vmul.f32 %v532, %v533
      %v543 = vsub.f32 %v478, %v534
      %v544 = vsub.f32 %v479, %v534
      %v545 = vsub.f32 %v480, %v535
      %v546 = vsub.f32 %v481, %v535
      %v547 = vsub.f32 %v482, %v536
      %v548 = vsub.f32 %v483, %v536
      %v549 = vsub.f32 %v484, %v537
      %v550 = vsub.f32 %v485, %v537
      %v551 = vsub.f32 %v486, %v538
      %v552 = vsub.f32 %v487, %v538
      %v553 = vsub.f32 %v488, %v539
      %v554 = vsub.f32 %v489, %v539
      %v555 = vsub.f32 %v490, %v540
      %v556 = vsub.f32 %v491, %v540
      %v557 = vsub.f32 %v492, %v541
      %v558 = vsub.f32 %v493, %v541
      %v559 = vsub.f32 %v494, %v542
      %v560 = vsub.f32 %v495, %v542
      %v561 = vmul.f32 %v543, %v543
      %v562 = vmul.f32 %v544, %v544
      %v563 = vmul.f32 %v545, %v545
      %v564 = vmul.f32 %v546, %v546
      %v565 = vmul.f32 %v547, %v547
      %v566 = vmul.f32 %v548, %v548
      %v567 = vmul.f32 %v549, %v549
      %v568 = vmul.f32 %v550, %v550
      %v569 = vmul.f32 %v551, %v551
      %v570 = vmul.f32 %v552, %v552
      %v571 = vmul.f32 %v553, %v553
      %v572 = vmul.f32 %v554, %v554
      %v573 = vmul.f32 %v555, %v555
      %v574 = vmul.f32 %v556, %v556
      %v575 = vmul.f32 %v557, %v557
      %v576 = vmul.f32 %v558, %v558
      %v577 = vmul.f32 %v559, %v559
      %v578 = vmul.f32 %v560, %v560
      %v579 = vsel %vm496, %v562, 0.0
      %v580 = vadd.f32 %v561, %v579
      %581 = vadd.xlane.f32.xlu0 %v580
      %v582 = vpop.xlane.xlu0 %581
      %v583 = vsel %vm496, %v564, 0.0
      %v584 = vadd.f32 %v563, %v583
      %585 = vadd.xlane.f32.xlu0 %v584
      %v586 = vpop.xlane.xlu0 %585
      %v587 = vsel %vm496, %v566, 0.0
      %v588 = vadd.f32 %v565, %v587
      %589 = vadd.xlane.f32.xlu0 %v588
      %v590 = vpop.xlane.xlu0 %589
      %v591 = vsel %vm496, %v568, 0.0
      %v592 = vadd.f32 %v567, %v591
      %593 = vadd.xlane.f32.xlu0 %v592
      %v594 = vpop.xlane.xlu0 %593
      %v595 = vsel %vm496, %v570, 0.0
      %v596 = vadd.f32 %v569, %v595
      %597 = vadd.xlane.f32.xlu0 %v596
      %v598 = vpop.xlane.xlu0 %597
      %v599 = vsel %vm496, %v572, 0.0
      %v600 = vadd.f32 %v571, %v599
      %601 = vadd.xlane.f32.xlu0 %v600
      %v602 = vpop.xlane.xlu0 %601
      %v603 = vsel %vm496, %v574, 0.0
      %v604 = vadd.f32 %v573, %v603
      %605 = vadd.xlane.f32.xlu0 %v604
      %v606 = vpop.xlane.xlu0 %605
      %v607 = vsel %vm496, %v576, 0.0
      %v608 = vadd.f32 %v575, %v607
      %609 = vadd.xlane.f32.xlu0 %v608
      %v610 = vpop.xlane.xlu0 %609
      %v611 = vsel %vm496, %v578, 0.0
      %v612 = vadd.f32 %v577, %v611
      %613 = vadd.xlane.f32.xlu0 %v612
      %v614 = vpop.xlane.xlu0 %613
      %v615 = vmul.f32 %v582, %v533
      %v616 = vmul.f32 %v586, %v533
      %v617 = vmul.f32 %v590, %v533
      %v618 = vmul.f32 %v594, %v533
      %v619 = vmul.f32 %v598, %v533
      %v620 = vmul.f32 %v602, %v533
      %v621 = vmul.f32 %v606, %v533
      %v622 = vmul.f32 %v610, %v533
      %v623 = vmul.f32 %v614, %v533
      %v624 = vadd.f32 %v615, 1e-05
      %v625 = vadd.f32 %v616, 1e-05
      %v626 = vadd.f32 %v617, 1e-05
      %v627 = vadd.f32 %v618, 1e-05
      %v628 = vadd.f32 %v619, 1e-05
      %v629 = vadd.f32 %v620, 1e-05
      %v630 = vadd.f32 %v621, 1e-05
      %v631 = vadd.f32 %v622, 1e-05
      %v632 = vadd.f32 %v623, 1e-05
      %v633 = vrsqrt.pop %v624
      %v634 = vrsqrt.pop %v625
      %v635 = vrsqrt.pop %v626
      %v636 = vrsqrt.pop %v627
      %v637 = vrsqrt.pop %v628
      %v638 = vrsqrt.pop %v629
      %v639 = vrsqrt.pop %v630
      %v640 = vrsqrt.pop %v631
      %v641 = vrsqrt.pop %v632
      %v642 = vmul.f32 %v543, %v633
      %v643 = vmul.f32 %v544, %v633
      %v644 = vmul.f32 %v545, %v634
      %v645 = vmul.f32 %v546, %v634
      %v646 = vmul.f32 %v547, %v635
      %v647 = vmul.f32 %v548, %v635
      %v648 = vmul.f32 %v549, %v636
      %v649 = vmul.f32 %v550, %v636
      %v650 = vmul.f32 %v551, %v637
      %v651 = vmul.f32 %v552, %v637
      %v652 = vmul.f32 %v553, %v638
      %v653 = vmul.f32 %v554, %v638
      %v654 = vmul.f32 %v555, %v639
      %v655 = vmul.f32 %v556, %v639
      %v656 = vmul.f32 %v557, %v640
      %v657 = vmul.f32 %v558, %v640
      %v658 = vmul.f32 %v559, %v641
      %v659 = vmul.f32 %v560, %v641
      %v660 = vld [vmem:[%s1] sm:$0x3]
      %v662 = vlaneseq
      %v663 = vshrl.u32 %v662, 7
      %v664 = vsub.s32 0, %v663
      %v665 = vrot.slane %v660, %v664
      %v666 = vlaneseq
      %v667 = vshrl.u32 %v666, 7
      %v668 = vsub.s32 1, %v667
      %v669 = vrot.slane %v660, %v668
      %v672 = vmul.f32 %v642, %v665
      %v673 = vmul.f32 %v643, %v669
      %v674 = vmul.f32 %v644, %v665
      %v675 = vmul.f32 %v645, %v669
      %v676 = vmul.f32 %v646, %v665
      %v677 = vmul.f32 %v647, %v669
      %v678 = vmul.f32 %v648, %v665
      %v679 = vmul.f32 %v649, %v669
      %v680 = vmul.f32 %v650, %v665
      %v681 = vmul.f32 %v651, %v669
      %v682 = vmul.f32 %v652, %v665
      %v683 = vmul.f32 %v653, %v669
      %v684 = vmul.f32 %v654, %v665
      %v685 = vmul.f32 %v655, %v669
      %v686 = vmul.f32 %v656, %v665
      %v687 = vmul.f32 %v657, %v669
      %v688 = vmul.f32 %v658, %v665
      %v689 = vmul.f32 %v659, %v669
      %v690 = vld [vmem:[%s2] sm:$0x3]
      %v692 = vlaneseq
      %v693 = vshrl.u32 %v692, 7
      %v694 = vsub.s32 0, %v693
      %v695 = vrot.slane %v690, %v694
      %v696 = vlaneseq
      %v697 = vshrl.u32 %v696, 7
      %v698 = vsub.s32 1, %v697
      %v699 = vrot.slane %v690, %v698
      %v702 = vadd.f32 %v672, %v695
      %v703 = vadd.f32 %v673, %v699
      %v704 = vadd.f32 %v674, %v695
      %v705 = vadd.f32 %v675, %v699
      %v706 = vadd.f32 %v676, %v695
      %v707 = vadd.f32 %v677, %v699
      %v708 = vadd.f32 %v678, %v695
      %v709 = vadd.f32 %v679, %v699
      %v710 = vadd.f32 %v680, %v695
      %v711 = vadd.f32 %v681, %v699
      %v712 = vadd.f32 %v682, %v695
      %v713 = vadd.f32 %v683, %v699
      %v714 = vadd.f32 %v684, %v695
      %v715 = vadd.f32 %v685, %v699
      %v716 = vadd.f32 %v686, %v695
      %v717 = vadd.f32 %v687, %v699
      %v718 = vadd.f32 %v688, %v695
      %v719 = vadd.f32 %v689, %v699
      %v720 = vpack.c.bf16 %v704, %v702
      %v721 = vpack.c.bf16 %v705, %v703
      %v722 = vpack.c.bf16 %v708, %v706
      %v723 = vpack.c.bf16 %v709, %v707
      %v724 = vpack.c.bf16 %v712, %v710
      %v725 = vpack.c.bf16 %v713, %v711
      %v726 = vpack.c.bf16 %v716, %v714
      %v727 = vpack.c.bf16 %v717, %v715
      %v728 = vpack.c.bf16 %v718, %v718
      %v729 = vpack.c.bf16 %v719, %v719
      %v730 = vld [vmem:[%s3] sm:$0xf]
      %v731 = vld [vmem:[%s3 + $0x4] sm:$0xf]
      %v732 = vld [vmem:[%s3 + $0x8] sm:$0xf]
      %v733 = vld [vmem:[%s3 + $0xc] sm:$0xf]
      %v734 = vld [vmem:[%s3 + $0x10] sm:$0xf]
      %v735 = vld [vmem:[%s3 + $0x14] sm:$0xf]
      %v736 = vld [vmem:[%s3 + $0x18] sm:$0xf]
      %v737 = vld [vmem:[%s3 + $0x1c] sm:$0xf]
      %v738 = vld [vmem:[%s3 + $0x20] sm:$0xf]
      %v739 = vld [vmem:[%s3 + $0x24] sm:$0xf]
      %v740 = vld [vmem:[%s3 + $0x28] sm:$0xf]
      %v741 = vld [vmem:[%s3 + $0x2c] sm:$0xf]
      %v742 = vld [vmem:[%s3 + $0x30] sm:$0xf]
      %v743 = vld [vmem:[%s3 + $0x34] sm:$0xf]
      %v744 = vld [vmem:[%s3 + $0x38] sm:$0xf]
      %v745 = vld [vmem:[%s3 + $0x3c] sm:$0xf]
      %v746 = vld [vmem:[%s3 + $0x40] sm:$0xf]
      %v747 = vld [vmem:[%s3 + $0x44] sm:$0xf]
      %v766 = vunpack.c.l.b16 %v730
      %v767 = vunpack.c.l.b16 %v731
      %v768 = vunpack.c.l.b16 %v732
      %v769 = vunpack.c.l.b16 %v733
      %v770 = vunpack.c.l.b16 %v734
      %v771 = vunpack.c.l.b16 %v735
      %v772 = vunpack.c.l.b16 %v736
      %v773 = vunpack.c.l.b16 %v737
      %v774 = vunpack.c.l.b16 %v738
      %v775 = vunpack.c.l.b16 %v739
      %v776 = vunpack.c.l.b16 %v740
      %v777 = vunpack.c.l.b16 %v741
      %v778 = vunpack.c.l.b16 %v742
      %v779 = vunpack.c.l.b16 %v743
      %v780 = vunpack.c.l.b16 %v744
      %v781 = vunpack.c.l.b16 %v745
      %v782 = vunpack.c.l.b16 %v746
      %v783 = vunpack.c.l.b16 %v747
      %v784 = vpack.c.b16 %v767, %v766
      %v785 = vpack.c.b16 %v769, %v768
      %v786 = vpack.c.b16 %v771, %v770
      %v787 = vpack.c.b16 %v773, %v772
      %v788 = vpack.c.b16 %v775, %v774
      %v789 = vpack.c.b16 %v777, %v776
      %v790 = vpack.c.b16 %v779, %v778
      %v791 = vpack.c.b16 %v781, %v780
      %v792 = vpack.c.b16 %v783, %v782
      %v803 = vsel %vm496, %v721, 0
      %v806 = vsel %vm496, %v723, 0
      %v809 = vsel %vm496, %v725, 0
      %v812 = vsel %vm496, %v727, 0
      %v815 = vsel %vm496, %v729, 0
      %817 = vmatprep.subr.bf16.mxu0 0
      %818 = vmatpush1.bf16.msra.mxu0 %v791
      %819 = vmatprep.subr.bf16.mxu0 0
      %820 = vmatpush1.bf16.msra.mxu0 %v790
      %821 = vmatprep.subr.bf16.mxu0 0
      %822 = vmatpush1.bf16.msra.mxu0 %v789
      %823 = vmatprep.subr.bf16.mxu0 0
      %824 = vmatpush1.bf16.msra.mxu0 %v788
      %825 = vmatprep.subr.bf16.mxu0 0
      %826 = vmatpush1.bf16.msra.mxu0 %v787
      %827 = vmatprep.subr.bf16.mxu0 0
      %828 = vmatpush1.bf16.msra.mxu0 %v786
      %829 = vmatprep.subr.bf16.mxu0 0
      %830 = vmatpush1.bf16.msra.mxu0 %v785
      %831 = vmatprep.subr.bf16.mxu0 0
      %832 = vmatpush1.bf16.msra.mxu0 %v784
      %833 = vmatprep.subr.bf16.mxu0 0
      %834 = vmatpush2.bf16.msra.mxu0 0
      %835 = vmatprep.subr.bf16.mxu0 0
      %836 = vmatpush2.bf16.msra.mxu0 0
      %837 = vmatprep.subr.bf16.mxu0 0
      %838 = vmatpush2.bf16.msra.mxu0 0
      %839 = vmatprep.subr.bf16.mxu0 0
      %840 = vmatpush2.bf16.msra.mxu0 0
      %841 = vmatprep.subr.bf16.mxu0 0
      %842 = vmatpush2.bf16.msra.mxu0 0
      %843 = vmatprep.subr.bf16.mxu0 0
      %844 = vmatpush2.bf16.msra.mxu0 0
      %845 = vmatprep.subr.bf16.mxu0 0
      %846 = vmatpush2.bf16.msra.mxu0 0
      %847 = vmatprep.subr.bf16.mxu0 0
      %848 = vmatpush2.bf16.msra.mxu0 %v792
      %849 = vmatprep.mubr.bf16.mxu0 %v803
      %850 = vmatmul.mubr.bf16.gmra.mxu0 %v720
      %v851 = vpop.f32.mrf.mxu0
      %v852 = vadd.f32 0.0, %v851
      %v853 = vpop.f32.mrf.mxu0
      %v854 = vpop.f32.mrf.mxu0
      %v855 = vadd.f32 0.0, %v854
      %v856 = vpop.f32.mrf.mxu0
      %857 = vmatprep.mubr.bf16.mxu0 %v806
      %858 = vmatmul.mubr.bf16.gmra.mxu0 %v722
      %v859 = vpop.f32.mrf.mxu0
      %v860 = vadd.f32 0.0, %v859
      %v861 = vpop.f32.mrf.mxu0
      %v862 = vpop.f32.mrf.mxu0
      %v863 = vadd.f32 0.0, %v862
      %v864 = vpop.f32.mrf.mxu0
      %865 = vmatprep.mubr.bf16.mxu0 %v809
      %866 = vmatmul.mubr.bf16.gmra.mxu0 %v724
      %v867 = vpop.f32.mrf.mxu0
      %v868 = vadd.f32 0.0, %v867
      %v869 = vpop.f32.mrf.mxu0
      %v870 = vpop.f32.mrf.mxu0
      %v871 = vadd.f32 0.0, %v870
      %v872 = vpop.f32.mrf.mxu0
      %873 = vmatprep.mubr.bf16.mxu0 %v812
      %874 = vmatmul.mubr.bf16.gmra.mxu0 %v726
      %v875 = vpop.f32.mrf.mxu0
      %v876 = vadd.f32 0.0, %v875
      %v877 = vpop.f32.mrf.mxu0
      %v878 = vpop.f32.mrf.mxu0
      %v879 = vadd.f32 0.0, %v878
      %v880 = vpop.f32.mrf.mxu0
      %881 = vmatprep.mubr.bf16.mxu0 %v815
      %882 = vmatmul.mubr.bf16.gmra.mxu0 %v728
      %v883 = vpop.f32.mrf.mxu0
      %v884 = vadd.f32 0.0, %v883
      %v885 = vpop.f32.mrf.mxu0
      %v886 = vpop.f32.mrf.mxu0
      %v887 = vpop.f32.mrf.mxu0
      %888 = vdwg.mxu0
      %v889 = vld [vmem:[%s4] sm:$0xf]
      %v890 = vld [vmem:[%s4 + $0x4] sm:$0xf]
      %v891 = vld [vmem:[%s4 + $0x8] sm:$0xf]
      %v892 = vld [vmem:[%s4 + $0xc] sm:$0xf]
      %v893 = vld [vmem:[%s4 + $0x10] sm:$0xf]
      %v894 = vld [vmem:[%s4 + $0x14] sm:$0xf]
      %v895 = vld [vmem:[%s4 + $0x18] sm:$0xf]
      %v896 = vld [vmem:[%s4 + $0x1c] sm:$0xf]
      %v897 = vld [vmem:[%s4 + $0x20] sm:$0xf]
      %v898 = vld [vmem:[%s4 + $0x24] sm:$0xf]
      %v899 = vld [vmem:[%s4 + $0x28] sm:$0xf]
      %v900 = vld [vmem:[%s4 + $0x2c] sm:$0xf]
      %v901 = vld [vmem:[%s4 + $0x30] sm:$0xf]
      %v902 = vld [vmem:[%s4 + $0x34] sm:$0xf]
      %v903 = vld [vmem:[%s4 + $0x38] sm:$0xf]
      %v904 = vld [vmem:[%s4 + $0x3c] sm:$0xf]
      %v905 = vld [vmem:[%s4 + $0x40] sm:$0xf]
      %v906 = vld [vmem:[%s4 + $0x44] sm:$0xf]
      %v925 = vunpack.c.l.b16 %v889
      %v926 = vunpack.c.l.b16 %v890
      %v927 = vunpack.c.l.b16 %v891
      %v928 = vunpack.c.l.b16 %v892
      %v929 = vunpack.c.l.b16 %v893
      %v930 = vunpack.c.l.b16 %v894
      %v931 = vunpack.c.l.b16 %v895
      %v932 = vunpack.c.l.b16 %v896
      %v933 = vunpack.c.l.b16 %v897
      %v934 = vunpack.c.l.b16 %v898
      %v935 = vunpack.c.l.b16 %v899
      %v936 = vunpack.c.l.b16 %v900
      %v937 = vunpack.c.l.b16 %v901
      %v938 = vunpack.c.l.b16 %v902
      %v939 = vunpack.c.l.b16 %v903
      %v940 = vunpack.c.l.b16 %v904
      %v941 = vunpack.c.l.b16 %v905
      %v942 = vunpack.c.l.b16 %v906
      %v943 = vpack.c.b16 %v926, %v925
      %v944 = vpack.c.b16 %v928, %v927
      %v945 = vpack.c.b16 %v930, %v929
      %v946 = vpack.c.b16 %v932, %v931
      %v947 = vpack.c.b16 %v934, %v933
      %v948 = vpack.c.b16 %v936, %v935
      %v949 = vpack.c.b16 %v938, %v937
      %v950 = vpack.c.b16 %v940, %v939
      %v951 = vpack.c.b16 %v942, %v941
      %961 = vmatprep.subr.bf16.mxu0 0
      %962 = vmatpush1.bf16.msra.mxu0 %v950
      %963 = vmatprep.subr.bf16.mxu0 0
      %964 = vmatpush1.bf16.msra.mxu0 %v949
      %965 = vmatprep.subr.bf16.mxu0 0
      %966 = vmatpush1.bf16.msra.mxu0 %v948
      %967 = vmatprep.subr.bf16.mxu0 0
      %968 = vmatpush1.bf16.msra.mxu0 %v947
      %969 = vmatprep.subr.bf16.mxu0 0
      %970 = vmatpush1.bf16.msra.mxu0 %v946
      %971 = vmatprep.subr.bf16.mxu0 0
      %972 = vmatpush1.bf16.msra.mxu0 %v945
      %973 = vmatprep.subr.bf16.mxu0 0
      %974 = vmatpush1.bf16.msra.mxu0 %v944
      %975 = vmatprep.subr.bf16.mxu0 0
      %976 = vmatpush1.bf16.msra.mxu0 %v943
      %977 = vmatprep.subr.bf16.mxu0 0
      %978 = vmatpush2.bf16.msra.mxu0 0
      %979 = vmatprep.subr.bf16.mxu0 0
      %980 = vmatpush2.bf16.msra.mxu0 0
      %981 = vmatprep.subr.bf16.mxu0 0
      %982 = vmatpush2.bf16.msra.mxu0 0
      %983 = vmatprep.subr.bf16.mxu0 0
      %984 = vmatpush2.bf16.msra.mxu0 0
      %985 = vmatprep.subr.bf16.mxu0 0
      %986 = vmatpush2.bf16.msra.mxu0 0
      %987 = vmatprep.subr.bf16.mxu0 0
      %988 = vmatpush2.bf16.msra.mxu0 0
      %989 = vmatprep.subr.bf16.mxu0 0
      %990 = vmatpush2.bf16.msra.mxu0 0
      %991 = vmatprep.subr.bf16.mxu0 0
      %992 = vmatpush2.bf16.msra.mxu0 %v951
      %993 = vmatprep.mubr.bf16.mxu0 %v803
      %994 = vmatmul.mubr.bf16.gmra.mxu0 %v720
      %v995 = vpop.f32.mrf.mxu0
      %v996 = vadd.f32 0.0, %v995
      %v997 = vpop.f32.mrf.mxu0
      %v998 = vpop.f32.mrf.mxu0
      %v999 = vadd.f32 0.0, %v998
      %v1000 = vpop.f32.mrf.mxu0
      %1001 = vmatprep.mubr.bf16.mxu0 %v806
      %1002 = vmatmul.mubr.bf16.gmra.mxu0 %v722
      %v1003 = vpop.f32.mrf.mxu0
      %v1004 = vadd.f32 0.0, %v1003
      %v1005 = vpop.f32.mrf.mxu0
      %v1006 = vpop.f32.mrf.mxu0
      %v1007 = vadd.f32 0.0, %v1006
      %v1008 = vpop.f32.mrf.mxu0
      %1009 = vmatprep.mubr.bf16.mxu0 %v809
      %1010 = vmatmul.mubr.bf16.gmra.mxu0 %v724
      %v1011 = vpop.f32.mrf.mxu0
      %v1012 = vadd.f32 0.0, %v1011
      %v1013 = vpop.f32.mrf.mxu0
      %v1014 = vpop.f32.mrf.mxu0
      %v1015 = vadd.f32 0.0, %v1014
      %v1016 = vpop.f32.mrf.mxu0
      %1017 = vmatprep.mubr.bf16.mxu0 %v812
      %1018 = vmatmul.mubr.bf16.gmra.mxu0 %v726
      %v1019 = vpop.f32.mrf.mxu0
      %v1020 = vadd.f32 0.0, %v1019
      %v1021 = vpop.f32.mrf.mxu0
      %v1022 = vpop.f32.mrf.mxu0
      %v1023 = vadd.f32 0.0, %v1022
      %v1024 = vpop.f32.mrf.mxu0
      %1025 = vmatprep.mubr.bf16.mxu0 %v815
      %1026 = vmatmul.mubr.bf16.gmra.mxu0 %v728
      %v1027 = vpop.f32.mrf.mxu0
      %v1028 = vadd.f32 0.0, %v1027
      %v1029 = vpop.f32.mrf.mxu0
      %v1030 = vpop.f32.mrf.mxu0
      %v1031 = vpop.f32.mrf.mxu0
      %1032 = vdwg.mxu0
      %v1033 = vld [vmem:[%s5] sm:$0xf]
      %v1034 = vld [vmem:[%s5 + $0x4] sm:$0xf]
      %v1035 = vld [vmem:[%s5 + $0x8] sm:$0xf]
      %v1036 = vld [vmem:[%s5 + $0xc] sm:$0xf]
      %v1037 = vld [vmem:[%s5 + $0x10] sm:$0xf]
      %v1038 = vld [vmem:[%s5 + $0x14] sm:$0xf]
      %v1039 = vld [vmem:[%s5 + $0x18] sm:$0xf]
      %v1040 = vld [vmem:[%s5 + $0x1c] sm:$0xf]
      %v1041 = vld [vmem:[%s5 + $0x20] sm:$0xf]
      %v1042 = vld [vmem:[%s5 + $0x24] sm:$0xf]
      %v1043 = vld [vmem:[%s5 + $0x28] sm:$0xf]
      %v1044 = vld [vmem:[%s5 + $0x2c] sm:$0xf]
      %v1045 = vld [vmem:[%s5 + $0x30] sm:$0xf]
      %v1046 = vld [vmem:[%s5 + $0x34] sm:$0xf]
      %v1047 = vld [vmem:[%s5 + $0x38] sm:$0xf]
      %v1048 = vld [vmem:[%s5 + $0x3c] sm:$0xf]
      %v1049 = vld [vmem:[%s5 + $0x40] sm:$0xf]
      %v1050 = vld [vmem:[%s5 + $0x44] sm:$0xf]
      %v1069 = vunpack.c.l.b16 %v1033
      %v1070 = vunpack.c.l.b16 %v1034
      %v1071 = vunpack.c.l.b16 %v1035
      %v1072 = vunpack.c.l.b16 %v1036
      %v1073 = vunpack.c.l.b16 %v1037
      %v1074 = vunpack.c.l.b16 %v1038
      %v1075 = vunpack.c.l.b16 %v1039
      %v1076 = vunpack.c.l.b16 %v1040
      %v1077 = vunpack.c.l.b16 %v1041
      %v1078 = vunpack.c.l.b16 %v1042
      %v1079 = vunpack.c.l.b16 %v1043
      %v1080 = vunpack.c.l.b16 %v1044
      %v1081 = vunpack.c.l.b16 %v1045
      %v1082 = vunpack.c.l.b16 %v1046
      %v1083 = vunpack.c.l.b16 %v1047
      %v1084 = vunpack.c.l.b16 %v1048
      %v1085 = vunpack.c.l.b16 %v1049
      %v1086 = vunpack.c.l.b16 %v1050
      %v1087 = vpack.c.b16 %v1070, %v1069
      %v1088 = vpack.c.b16 %v1072, %v1071
      %v1089 = vpack.c.b16 %v1074, %v1073
      %v1090 = vpack.c.b16 %v1076, %v1075
      %v1091 = vpack.c.b16 %v1078, %v1077
      %v1092 = vpack.c.b16 %v1080, %v1079
      %v1093 = vpack.c.b16 %v1082, %v1081
      %v1094 = vpack.c.b16 %v1084, %v1083
      %v1095 = vpack.c.b16 %v1086, %v1085
      %1105 = vmatprep.subr.bf16.mxu0 0
      %1106 = vmatpush1.bf16.msra.mxu0 %v1094
      %1107 = vmatprep.subr.bf16.mxu0 0
      %1108 = vmatpush1.bf16.msra.mxu0 %v1093
      %1109 = vmatprep.subr.bf16.mxu0 0
      %1110 = vmatpush1.bf16.msra.mxu0 %v1092
      %1111 = vmatprep.subr.bf16.mxu0 0
      %1112 = vmatpush1.bf16.msra.mxu0 %v1091
      %1113 = vmatprep.subr.bf16.mxu0 0
      %1114 = vmatpush1.bf16.msra.mxu0 %v1090
      %1115 = vmatprep.subr.bf16.mxu0 0
      %1116 = vmatpush1.bf16.msra.mxu0 %v1089
      %1117 = vmatprep.subr.bf16.mxu0 0
      %1118 = vmatpush1.bf16.msra.mxu0 %v1088
      %1119 = vmatprep.subr.bf16.mxu0 0
      %1120 = vmatpush1.bf16.msra.mxu0 %v1087
      %1121 = vmatprep.subr.bf16.mxu0 0
      %1122 = vmatpush2.bf16.msra.mxu0 0
      %1123 = vmatprep.subr.bf16.mxu0 0
      %1124 = vmatpush2.bf16.msra.mxu0 0
      %1125 = vmatprep.subr.bf16.mxu0 0
      %1126 = vmatpush2.bf16.msra.mxu0 0
      %1127 = vmatprep.subr.bf16.mxu0 0
      %1128 = vmatpush2.bf16.msra.mxu0 0
      %1129 = vmatprep.subr.bf16.mxu0 0
      %1130 = vmatpush2.bf16.msra.mxu0 0
      %1131 = vmatprep.subr.bf16.mxu0 0
      %1132 = vmatpush2.bf16.msra.mxu0 0
      %1133 = vmatprep.subr.bf16.mxu0 0
      %1134 = vmatpush2.bf16.msra.mxu0 0
      %1135 = vmatprep.subr.bf16.mxu0 0
      %1136 = vmatpush2.bf16.msra.mxu0 %v1095
      %1137 = vmatprep.mubr.bf16.mxu0 %v803
      %1138 = vmatmul.mubr.bf16.gmra.mxu0 %v720
      %v1139 = vpop.f32.mrf.mxu0
      %v1140 = vadd.f32 0.0, %v1139
      %v1141 = vpop.f32.mrf.mxu0
      %v1142 = vpop.f32.mrf.mxu0
      %v1143 = vadd.f32 0.0, %v1142
      %v1144 = vpop.f32.mrf.mxu0
      %1145 = vmatprep.mubr.bf16.mxu0 %v806
      %1146 = vmatmul.mubr.bf16.gmra.mxu0 %v722
      %v1147 = vpop.f32.mrf.mxu0
      %v1148 = vadd.f32 0.0, %v1147
      %v1149 = vpop.f32.mrf.mxu0
      %v1150 = vpop.f32.mrf.mxu0
      %v1151 = vadd.f32 0.0, %v1150
      %v1152 = vpop.f32.mrf.mxu0
      %1153 = vmatprep.mubr.bf16.mxu0 %v809
      %1154 = vmatmul.mubr.bf16.gmra.mxu0 %v724
      %v1155 = vpop.f32.mrf.mxu0
      %v1156 = vadd.f32 0.0, %v1155
      %v1157 = vpop.f32.mrf.mxu0
      %v1158 = vpop.f32.mrf.mxu0
      %v1159 = vadd.f32 0.0, %v1158
      %v1160 = vpop.f32.mrf.mxu0
      %1161 = vmatprep.mubr.bf16.mxu0 %v812
      %1162 = vmatmul.mubr.bf16.gmra.mxu0 %v726
      %v1163 = vpop.f32.mrf.mxu0
      %v1164 = vadd.f32 0.0, %v1163
      %v1165 = vpop.f32.mrf.mxu0
      %v1166 = vpop.f32.mrf.mxu0
      %v1167 = vadd.f32 0.0, %v1166
      %v1168 = vpop.f32.mrf.mxu0
      %1169 = vmatprep.mubr.bf16.mxu0 %v815
      %1170 = vmatmul.mubr.bf16.gmra.mxu0 %v728
      %v1171 = vpop.f32.mrf.mxu0
      %v1172 = vadd.f32 0.0, %v1171
      %v1173 = vpop.f32.mrf.mxu0
      %v1174 = vpop.f32.mrf.mxu0
      %v1175 = vpop.f32.mrf.mxu0
      %1176 = vdwg.mxu0
      %v1177 = vpack.c.bf16 %v855, %v852
      %v1178 = vpack.c.bf16 %v863, %v860
      %v1179 = vpack.c.bf16 %v871, %v868
      %v1180 = vpack.c.bf16 %v879, %v876
      %v1181 = vpack.c.bf16 %v884, %v884
      %v1182 = vpack.c.bf16 %v999, %v996
      %v1183 = vpack.c.bf16 %v1007, %v1004
      %v1184 = vpack.c.bf16 %v1015, %v1012
      %v1185 = vpack.c.bf16 %v1023, %v1020
      %v1186 = vpack.c.bf16 %v1028, %v1028
      %v1187 = vpack.c.bf16 %v1143, %v1140
      %v1188 = vpack.c.bf16 %v1151, %v1148
      %v1189 = vpack.c.bf16 %v1159, %v1156
      %v1190 = vpack.c.bf16 %v1167, %v1164
      %v1191 = vpack.c.bf16 %v1172, %v1172
      %1192 = vmatprep.subr.bf16.mxu0 0
      %1193 = vmatpush1.bf16.xpose.msra.mxu0 0
      %1194 = vmatprep.subr.bf16.mxu0 0
      %1195 = vmatpush1.bf16.xpose.msra.mxu0 0
      %1196 = vmatprep.subr.bf16.mxu0 0
      %1197 = vmatpush1.bf16.xpose.msra.mxu0 0
      %1198 = vmatprep.subr.bf16.mxu0 0
      %1199 = vmatpush1.bf16.xpose.msra.mxu0 %v1186
      %1200 = vmatprep.subr.bf16.mxu0 0
      %1201 = vmatpush1.bf16.xpose.msra.mxu0 %v1185
      %1202 = vmatprep.subr.bf16.mxu0 0
      %1203 = vmatpush1.bf16.xpose.msra.mxu0 %v1184
      %1204 = vmatprep.subr.bf16.mxu0 0
      %1205 = vmatpush1.bf16.xpose.msra.mxu0 %v1183
      %1206 = vmatprep.subr.bf16.mxu0 0
      %1207 = vmatpush1.bf16.xpose.msra.mxu0 %v1182
      %1208 = vmatprep.subr.bf16.mxu0 0
      %1209 = vmatpush2.bf16.xpose.msra.mxu0 0
      %1210 = vmatprep.subr.bf16.mxu0 0
      %1211 = vmatpush2.bf16.xpose.msra.mxu0 0
      %1212 = vmatprep.subr.bf16.mxu0 0
      %1213 = vmatpush2.bf16.xpose.msra.mxu0 0
      %1214 = vmatprep.subr.bf16.mxu0 0
      %1215 = vmatpush2.bf16.xpose.msra.mxu0 0
      %1216 = vmatprep.subr.bf16.mxu0 0
      %1217 = vmatpush2.bf16.xpose.msra.mxu0 0
      %1218 = vmatprep.subr.bf16.mxu0 0
      %1219 = vmatpush2.bf16.xpose.msra.mxu0 0
      %1220 = vmatprep.subr.bf16.mxu0 0
      %1221 = vmatpush2.bf16.xpose.msra.mxu0 0
      %1222 = vmatprep.subr.bf16.mxu0 0
      %1223 = vmatpush2.bf16.xpose.msra.mxu0 0
      %1224 = vmatprep.mubr.bf16.mxu0 0
      %1225 = vmatmul.mubr.bf16.gmra.mxu0 %v1177
      %v1226 = vpop.f32.mrf.mxu0
      %v1227 = vadd.f32 0.0, %v1226
      %v1228 = vpop.f32.mrf.mxu0
      %v1229 = vpop.f32.mrf.mxu0
      %v1230 = vadd.f32 0.0, %v1229
      %v1231 = vpop.f32.mrf.mxu0
      %1232 = vmatprep.mubr.bf16.mxu0 0
      %1233 = vmatmul.mubr.bf16.gmra.mxu0 %v1178
      %v1234 = vpop.f32.mrf.mxu0
      %v1235 = vadd.f32 0.0, %v1234
      %v1236 = vpop.f32.mrf.mxu0
      %v1237 = vpop.f32.mrf.mxu0
      %v1238 = vadd.f32 0.0, %v1237
      %v1239 = vpop.f32.mrf.mxu0
      %1240 = vmatprep.mubr.bf16.mxu0 0
      %1241 = vmatmul.mubr.bf16.gmra.mxu0 %v1179
      %v1242 = vpop.f32.mrf.mxu0
      %v1243 = vadd.f32 0.0, %v1242
      %v1244 = vpop.f32.mrf.mxu0
      %v1245 = vpop.f32.mrf.mxu0
      %v1246 = vadd.f32 0.0, %v1245
      %v1247 = vpop.f32.mrf.mxu0
      %1248 = vmatprep.mubr.bf16.mxu0 0
      %1249 = vmatmul.mubr.bf16.gmra.mxu0 %v1180
      %v1250 = vpop.f32.mrf.mxu0
      %v1251 = vadd.f32 0.0, %v1250
      %v1252 = vpop.f32.mrf.mxu0
      %v1253 = vpop.f32.mrf.mxu0
      %v1254 = vadd.f32 0.0, %v1253
      %v1255 = vpop.f32.mrf.mxu0
      %1256 = vmatprep.mubr.bf16.mxu0 0
      %1257 = vmatmul.mubr.bf16.gmra.mxu0 %v1181
      %v1258 = vpop.f32.mrf.mxu0
      %v1259 = vadd.f32 0.0, %v1258
      %v1260 = vpop.f32.mrf.mxu0
      %v1261 = vpop.f32.mrf.mxu0
      %v1262 = vpop.f32.mrf.mxu0
      %1263 = vdwg.mxu0
      %v1264 = vlaneseq
      %v1265 = vand.u32 %v1264, 127
      %vm1266 = vcmp.lt.s32.totalorder %v1265, 65
      %v1267 = vsel %vm1266, 1, 0
      %vm1268 = vcmp.eq.s32.totalorder %v1267, 1
      %v1269 = vsel %vm1268, %v1227, -1e+30
      %v1270 = vsel %vm1268, %v1230, -1e+30
      %v1271 = vsel %vm1268, %v1235, -1e+30
      %v1272 = vsel %vm1268, %v1238, -1e+30
      %v1273 = vsel %vm1268, %v1243, -1e+30
      %v1274 = vsel %vm1268, %v1246, -1e+30
      %v1275 = vsel %vm1268, %v1251, -1e+30
      %v1276 = vsel %vm1268, %v1254, -1e+30
      %v1277 = vsel %vm1268, %v1259, -1e+30
      %vm1278 = vcmask 588800
      %v1279 = vsel %vm1278, %v1269, -inf
      %1280 = vmax.xlane.f32.xlu0 %v1279
      %v1281 = vpop.xlane.xlu0 %1280
      %v1282 = vsel %vm1278, %v1270, -inf
      %1283 = vmax.xlane.f32.xlu0 %v1282
      %v1284 = vpop.xlane.xlu0 %1283
      %v1285 = vsel %vm1278, %v1271, -inf
      %1286 = vmax.xlane.f32.xlu0 %v1285
      %v1287 = vpop.xlane.xlu0 %1286
      %v1288 = vsel %vm1278, %v1272, -inf
      %1289 = vmax.xlane.f32.xlu0 %v1288
      %v1290 = vpop.xlane.xlu0 %1289
      %v1291 = vsel %vm1278, %v1273, -inf
      %1292 = vmax.xlane.f32.xlu0 %v1291
      %v1293 = vpop.xlane.xlu0 %1292
      %v1294 = vsel %vm1278, %v1274, -inf
      %1295 = vmax.xlane.f32.xlu0 %v1294
      %v1296 = vpop.xlane.xlu0 %1295
      %v1297 = vsel %vm1278, %v1275, -inf
      %1298 = vmax.xlane.f32.xlu0 %v1297
      %v1299 = vpop.xlane.xlu0 %1298
      %v1300 = vsel %vm1278, %v1276, -inf
      %1301 = vmax.xlane.f32.xlu0 %v1300
      %v1302 = vpop.xlane.xlu0 %1301
      %v1303 = vsel %vm1278, %v1277, -inf
      %1304 = vmax.xlane.f32.xlu0 %v1303
      %v1305 = vpop.xlane.xlu0 %1304
      %v1306 = vsub.f32 %v1269, %v1281
      %v1307 = vsub.f32 %v1270, %v1284
      %v1308 = vsub.f32 %v1271, %v1287
      %v1309 = vsub.f32 %v1272, %v1290
      %v1310 = vsub.f32 %v1273, %v1293
      %v1311 = vsub.f32 %v1274, %v1296
      %v1312 = vsub.f32 %v1275, %v1299
      %v1313 = vsub.f32 %v1276, %v1302
      %v1314 = vsub.f32 %v1277, %v1305
      %v1315 = vmul.f32 %v1306, 1.442695
      %v1316 = vpow.pop %v1315
      %v1317 = vmul.f32 %v1307, 1.442695
      %v1318 = vpow.pop %v1317
      %v1319 = vmul.f32 %v1308, 1.442695
      %v1320 = vpow.pop %v1319
      %v1321 = vmul.f32 %v1309, 1.442695
      %v1322 = vpow.pop %v1321
      %v1323 = vmul.f32 %v1310, 1.442695
      %v1324 = vpow.pop %v1323
      %v1325 = vmul.f32 %v1311, 1.442695
      %v1326 = vpow.pop %v1325
      %v1327 = vmul.f32 %v1312, 1.442695
      %v1328 = vpow.pop %v1327
      %v1329 = vmul.f32 %v1313, 1.442695
      %v1330 = vpow.pop %v1329
      %v1331 = vmul.f32 %v1314, 1.442695
      %v1332 = vpow.pop %v1331
      %v1333 = vsel %vm1278, %v1316, 0.0
      %1334 = vadd.xlane.f32.xlu0 %v1333
      %v1335 = vpop.xlane.xlu0 %1334
      %v1336 = vsel %vm1278, %v1318, 0.0
      %1337 = vadd.xlane.f32.xlu0 %v1336
      %v1338 = vpop.xlane.xlu0 %1337
      %v1339 = vsel %vm1278, %v1320, 0.0
      %1340 = vadd.xlane.f32.xlu0 %v1339
      %v1341 = vpop.xlane.xlu0 %1340
      %v1342 = vsel %vm1278, %v1322, 0.0
      %1343 = vadd.xlane.f32.xlu0 %v1342
      %v1344 = vpop.xlane.xlu0 %1343
      %v1345 = vsel %vm1278, %v1324, 0.0
      %1346 = vadd.xlane.f32.xlu0 %v1345
      %v1347 = vpop.xlane.xlu0 %1346
      %v1348 = vsel %vm1278, %v1326, 0.0
      %1349 = vadd.xlane.f32.xlu0 %v1348
      %v1350 = vpop.xlane.xlu0 %1349
      %v1351 = vsel %vm1278, %v1328, 0.0
      %1352 = vadd.xlane.f32.xlu0 %v1351
      %v1353 = vpop.xlane.xlu0 %1352
      %v1354 = vsel %vm1278, %v1330, 0.0
      %1355 = vadd.xlane.f32.xlu0 %v1354
      %v1356 = vpop.xlane.xlu0 %1355
      %v1357 = vsel %vm1278, %v1332, 0.0
      %1358 = vadd.xlane.f32.xlu0 %v1357
      %v1359 = vpop.xlane.xlu0 %1358
      %v1360 = vrcp.pop %v1335
      %v1361 = vrcp.pop %v1338
      %v1362 = vrcp.pop %v1341
      %v1363 = vrcp.pop %v1344
      %v1364 = vrcp.pop %v1347
      %v1365 = vrcp.pop %v1350
      %v1366 = vrcp.pop %v1353
      %v1367 = vrcp.pop %v1356
      %v1368 = vrcp.pop %v1359
      %v1369 = vmul.f32 %v1316, %v1360
      %v1370 = vmul.f32 %v1318, %v1361
      %v1371 = vmul.f32 %v1320, %v1362
      %v1372 = vmul.f32 %v1322, %v1363
      %v1373 = vmul.f32 %v1324, %v1364
      %v1374 = vmul.f32 %v1326, %v1365
      %v1375 = vmul.f32 %v1328, %v1366
      %v1376 = vmul.f32 %v1330, %v1367
      %v1377 = vmul.f32 %v1332, %v1368
      %v1378 = vpack.c.bf16 %v1370, %v1369
      %v1379 = vpack.c.bf16 %v1372, %v1371
      %v1380 = vpack.c.bf16 %v1374, %v1373
      %v1381 = vpack.c.bf16 %v1376, %v1375
      %v1382 = vpack.c.bf16 %v1377, %v1377
      %v1384 = vsel %vm1278, %v1378, 0
      %v1387 = vsel %vm1278, %v1379, 0
      %v1390 = vsel %vm1278, %v1380, 0
      %v1393 = vsel %vm1278, %v1381, 0
      %v1396 = vsel %vm1278, %v1382, 0
      %vm1398 = vcmask 1043456
      %v1400 = vsel %vm1398, %v1191, 0
      %1402 = vmatprep.subr.bf16.mxu0 0
      %1403 = vmatpush1.bf16.msra.mxu0 0
      %1404 = vmatprep.subr.bf16.mxu0 0
      %1405 = vmatpush1.bf16.msra.mxu0 0
      %1406 = vmatprep.subr.bf16.mxu0 0
      %1407 = vmatpush1.bf16.msra.mxu0 0
      %1408 = vmatprep.subr.bf16.mxu0 0
      %1409 = vmatpush1.bf16.msra.mxu0 %v1400
      %1410 = vmatprep.subr.bf16.mxu0 0
      %1411 = vmatpush1.bf16.msra.mxu0 %v1190
      %1412 = vmatprep.subr.bf16.mxu0 0
      %1413 = vmatpush1.bf16.msra.mxu0 %v1189
      %1414 = vmatprep.subr.bf16.mxu0 0
      %1415 = vmatpush1.bf16.msra.mxu0 %v1188
      %1416 = vmatprep.subr.bf16.mxu0 0
      %1417 = vmatpush1.bf16.msra.mxu0 %v1187
      %1418 = vmatprep.subr.bf16.mxu0 0
      %1419 = vmatpush2.bf16.msra.mxu0 0
      %1420 = vmatprep.subr.bf16.mxu0 0
      %1421 = vmatpush2.bf16.msra.mxu0 0
      %1422 = vmatprep.subr.bf16.mxu0 0
      %1423 = vmatpush2.bf16.msra.mxu0 0
      %1424 = vmatprep.subr.bf16.mxu0 0
      %1425 = vmatpush2.bf16.msra.mxu0 0
      %1426 = vmatprep.subr.bf16.mxu0 0
      %1427 = vmatpush2.bf16.msra.mxu0 0
      %1428 = vmatprep.subr.bf16.mxu0 0
      %1429 = vmatpush2.bf16.msra.mxu0 0
      %1430 = vmatprep.subr.bf16.mxu0 0
      %1431 = vmatpush2.bf16.msra.mxu0 0
      %1432 = vmatprep.subr.bf16.mxu0 0
      %1433 = vmatpush2.bf16.msra.mxu0 0
      %1434 = vmatprep.mubr.bf16.mxu0 0
      %1435 = vmatmul.mubr.bf16.gmra.mxu0 %v1384
      %v1436 = vpop.f32.mrf.mxu0
      %v1437 = vadd.f32 0.0, %v1436
      %v1438 = vpop.f32.mrf.mxu0
      %v1439 = vpop.f32.mrf.mxu0
      %v1440 = vadd.f32 0.0, %v1439
      %v1441 = vpop.f32.mrf.mxu0
      %1442 = vmatprep.mubr.bf16.mxu0 0
      %1443 = vmatmul.mubr.bf16.gmra.mxu0 %v1387
      %v1444 = vpop.f32.mrf.mxu0
      %v1445 = vadd.f32 0.0, %v1444
      %v1446 = vpop.f32.mrf.mxu0
      %v1447 = vpop.f32.mrf.mxu0
      %v1448 = vadd.f32 0.0, %v1447
      %v1449 = vpop.f32.mrf.mxu0
      %1450 = vmatprep.mubr.bf16.mxu0 0
      %1451 = vmatmul.mubr.bf16.gmra.mxu0 %v1390
      %v1452 = vpop.f32.mrf.mxu0
      %v1453 = vadd.f32 0.0, %v1452
      %v1454 = vpop.f32.mrf.mxu0
      %v1455 = vpop.f32.mrf.mxu0
      %v1456 = vadd.f32 0.0, %v1455
      %v1457 = vpop.f32.mrf.mxu0
      %1458 = vmatprep.mubr.bf16.mxu0 0
      %1459 = vmatmul.mubr.bf16.gmra.mxu0 %v1393
      %v1460 = vpop.f32.mrf.mxu0
      %v1461 = vadd.f32 0.0, %v1460
      %v1462 = vpop.f32.mrf.mxu0
      %v1463 = vpop.f32.mrf.mxu0
      %v1464 = vadd.f32 0.0, %v1463
      %v1465 = vpop.f32.mrf.mxu0
      %1466 = vmatprep.mubr.bf16.mxu0 0
      %1467 = vmatmul.mubr.bf16.gmra.mxu0 %v1396
      %v1468 = vpop.f32.mrf.mxu0
      %v1469 = vadd.f32 0.0, %v1468
      %v1470 = vpop.f32.mrf.mxu0
      %v1471 = vpop.f32.mrf.mxu0
      %v1472 = vpop.f32.mrf.mxu0
      %1473 = vdwg.mxu0
      %v1474 = vpack.c.bf16 %v1440, %v1437
      %v1475 = vpack.c.bf16 %v1448, %v1445
      %v1476 = vpack.c.bf16 %v1456, %v1453
      %v1477 = vpack.c.bf16 %v1464, %v1461
      %v1478 = vpack.c.bf16 %v1469, %v1469
      %v1479 = vld [vmem:[%s6] sm:$0xf]
      %v1480 = vld [vmem:[%s6 + $0x4] sm:$0xf]
      %v1481 = vld [vmem:[%s6 + $0x8] sm:$0xf]
      %v1482 = vld [vmem:[%s6 + $0xc] sm:$0xf]
      %v1483 = vld [vmem:[%s6 + $0x10] sm:$0xf]
      %v1484 = vld [vmem:[%s6 + $0x14] sm:$0xf]
      %v1485 = vld [vmem:[%s6 + $0x18] sm:$0xf]
      %v1486 = vld [vmem:[%s6 + $0x1c] sm:$0xf]
      %v1487 = vld [vmem:[%s6 + $0x20] sm:$0xf]
      %v1488 = vld [vmem:[%s6 + $0x24] sm:$0xf]
      %v1489 = vld [vmem:[%s6 + $0x28] sm:$0xf]
      %v1490 = vld [vmem:[%s6 + $0x2c] sm:$0xf]
      %v1491 = vld [vmem:[%s6 + $0x30] sm:$0xf]
      %v1492 = vld [vmem:[%s6 + $0x34] sm:$0xf]
      %v1493 = vld [vmem:[%s6 + $0x38] sm:$0xf]
      %v1494 = vld [vmem:[%s6 + $0x3c] sm:$0xf]
      %v1495 = vld [vmem:[%s7] sm:$0x1]
      %v1497 = vlaneseq
      %v1498 = vshrl.u32 %v1497, 7
      %v1499 = vsub.s32 0, %v1498
      %v1500 = vrot.slane %v1495, %v1499
      %v1518 = vunpack.c.l.b16 %v1479
      %v1519 = vunpack.c.l.b16 %v1480
      %v1520 = vunpack.c.l.b16 %v1481
      %v1521 = vunpack.c.l.b16 %v1482
      %v1522 = vunpack.c.l.b16 %v1483
      %v1523 = vunpack.c.l.b16 %v1484
      %v1524 = vunpack.c.l.b16 %v1485
      %v1525 = vunpack.c.l.b16 %v1486
      %v1526 = vunpack.c.l.b16 %v1487
      %v1527 = vunpack.c.l.b16 %v1488
      %v1528 = vunpack.c.l.b16 %v1489
      %v1529 = vunpack.c.l.b16 %v1490
      %v1530 = vunpack.c.l.b16 %v1491
      %v1531 = vunpack.c.l.b16 %v1492
      %v1532 = vunpack.c.l.b16 %v1493
      %v1533 = vunpack.c.l.b16 %v1494
      %v1534 = vpack.c.b16 %v1519, %v1518
      %v1535 = vpack.c.b16 %v1521, %v1520
      %v1536 = vpack.c.b16 %v1523, %v1522
      %v1537 = vpack.c.b16 %v1525, %v1524
      %v1538 = vpack.c.b16 %v1527, %v1526
      %v1539 = vpack.c.b16 %v1529, %v1528
      %v1540 = vpack.c.b16 %v1531, %v1530
      %v1541 = vpack.c.b16 %v1533, %v1532
      %1550 = vmatprep.subr.bf16.mxu0 0
      %1551 = vmatpush1.bf16.msra.mxu0 %v1541
      %1552 = vmatprep.subr.bf16.mxu0 0
      %1553 = vmatpush1.bf16.msra.mxu0 %v1540
      %1554 = vmatprep.subr.bf16.mxu0 0
      %1555 = vmatpush1.bf16.msra.mxu0 %v1539
      %1556 = vmatprep.subr.bf16.mxu0 0
      %1557 = vmatpush1.bf16.msra.mxu0 %v1538
      %1558 = vmatprep.subr.bf16.mxu0 0
      %1559 = vmatpush1.bf16.msra.mxu0 %v1537
      %1560 = vmatprep.subr.bf16.mxu0 0
      %1561 = vmatpush1.bf16.msra.mxu0 %v1536
      %1562 = vmatprep.subr.bf16.mxu0 0
      %1563 = vmatpush1.bf16.msra.mxu0 %v1535
      %1564 = vmatprep.subr.bf16.mxu0 0
      %1565 = vmatpush1.bf16.msra.mxu0 %v1534
      %1566 = vmatprep.subr.bf16.mxu0 0
      %1567 = vmatpush2.bf16.msra.mxu0 0
      %1568 = vmatprep.subr.bf16.mxu0 0
      %1569 = vmatpush2.bf16.msra.mxu0 0
      %1570 = vmatprep.subr.bf16.mxu0 0
      %1571 = vmatpush2.bf16.msra.mxu0 0
      %1572 = vmatprep.subr.bf16.mxu0 0
      %1573 = vmatpush2.bf16.msra.mxu0 0
      %1574 = vmatprep.subr.bf16.mxu0 0
      %1575 = vmatpush2.bf16.msra.mxu0 0
      %1576 = vmatprep.subr.bf16.mxu0 0
      %1577 = vmatpush2.bf16.msra.mxu0 0
      %1578 = vmatprep.subr.bf16.mxu0 0
      %1579 = vmatpush2.bf16.msra.mxu0 0
      %1580 = vmatprep.subr.bf16.mxu0 0
      %1581 = vmatpush2.bf16.msra.mxu0 0
      %1582 = vmatprep.mubr.bf16.mxu0 0
      %1583 = vmatmul.mubr.bf16.gmra.mxu0 %v1474
      %v1584 = vpop.f32.mrf.mxu0
      %v1585 = vadd.f32 %v1500, %v1584
      %v1586 = vpop.f32.mrf.mxu0
      %v1587 = vpop.f32.mrf.mxu0
      %v1588 = vadd.f32 %v1500, %v1587
      %v1589 = vpop.f32.mrf.mxu0
      %1590 = vmatprep.mubr.bf16.mxu0 0
      %1591 = vmatmul.mubr.bf16.gmra.mxu0 %v1475
      %v1592 = vpop.f32.mrf.mxu0
      %v1593 = vadd.f32 %v1500, %v1592
      %v1594 = vpop.f32.mrf.mxu0
      %v1595 = vpop.f32.mrf.mxu0
      %v1596 = vadd.f32 %v1500, %v1595
      %v1597 = vpop.f32.mrf.mxu0
      %1598 = vmatprep.mubr.bf16.mxu0 0
      %1599 = vmatmul.mubr.bf16.gmra.mxu0 %v1476
      %v1600 = vpop.f32.mrf.mxu0
      %v1601 = vadd.f32 %v1500, %v1600
      %v1602 = vpop.f32.mrf.mxu0
      %v1603 = vpop.f32.mrf.mxu0
      %v1604 = vadd.f32 %v1500, %v1603
      %v1605 = vpop.f32.mrf.mxu0
      %1606 = vmatprep.mubr.bf16.mxu0 0
      %1607 = vmatmul.mubr.bf16.gmra.mxu0 %v1477
      %v1608 = vpop.f32.mrf.mxu0
      %v1609 = vadd.f32 %v1500, %v1608
      %v1610 = vpop.f32.mrf.mxu0
      %v1611 = vpop.f32.mrf.mxu0
      %v1612 = vadd.f32 %v1500, %v1611
      %v1613 = vpop.f32.mrf.mxu0
      %1614 = vmatprep.mubr.bf16.mxu0 0
      %1615 = vmatmul.mubr.bf16.gmra.mxu0 %v1478
      %v1616 = vpop.f32.mrf.mxu0
      %v1617 = vadd.f32 %v1500, %v1616
      %v1618 = vpop.f32.mrf.mxu0
      %v1619 = vpop.f32.mrf.mxu0
      %v1620 = vpop.f32.mrf.mxu0
      %1621 = vdwg.mxu0
      %v1622 = vadd.f32 %v1140, %v1585
      %v1623 = vadd.f32 %v1143, %v1588
      %v1624 = vadd.f32 %v1148, %v1593
      %v1625 = vadd.f32 %v1151, %v1596
      %v1626 = vadd.f32 %v1156, %v1601
      %v1627 = vadd.f32 %v1159, %v1604
      %v1628 = vadd.f32 %v1164, %v1609
      %v1629 = vadd.f32 %v1167, %v1612
      %v1630 = vadd.f32 %v1172, %v1617
      %1631 = vadd.xlane.f32.xlu0 %v1622
      %v1632 = vpop.xlane.xlu0 %1631
      %1633 = vadd.xlane.f32.xlu0 %v1623
      %v1634 = vpop.xlane.xlu0 %1633
      %1635 = vadd.xlane.f32.xlu0 %v1624
      %v1636 = vpop.xlane.xlu0 %1635
      %1637 = vadd.xlane.f32.xlu0 %v1625
      %v1638 = vpop.xlane.xlu0 %1637
      %1639 = vadd.xlane.f32.xlu0 %v1626
      %v1640 = vpop.xlane.xlu0 %1639
      %1641 = vadd.xlane.f32.xlu0 %v1627
      %v1642 = vpop.xlane.xlu0 %1641
      %1643 = vadd.xlane.f32.xlu0 %v1628
      %v1644 = vpop.xlane.xlu0 %1643
      %1645 = vadd.xlane.f32.xlu0 %v1629
      %v1646 = vpop.xlane.xlu0 %1645
      %1647 = vadd.xlane.f32.xlu0 %v1630
      %v1648 = vpop.xlane.xlu0 %1647
      %v1649 = vmul.f32 %v1632, 0.0625
      %v1650 = vmul.f32 %v1634, 0.0625
      %v1651 = vmul.f32 %v1636, 0.0625
      %v1652 = vmul.f32 %v1638, 0.0625
      %v1653 = vmul.f32 %v1640, 0.0625
      %v1654 = vmul.f32 %v1642, 0.0625
      %v1655 = vmul.f32 %v1644, 0.0625
      %v1656 = vmul.f32 %v1646, 0.0625
      %v1657 = vmul.f32 %v1648, 0.0625
      %v1658 = vmul.f32 %v1622, %v1622
      %v1659 = vmul.f32 %v1623, %v1623
      %v1660 = vmul.f32 %v1624, %v1624
      %v1661 = vmul.f32 %v1625, %v1625
      %v1662 = vmul.f32 %v1626, %v1626
      %v1663 = vmul.f32 %v1627, %v1627
      %v1664 = vmul.f32 %v1628, %v1628
      %v1665 = vmul.f32 %v1629, %v1629
      %v1666 = vmul.f32 %v1630, %v1630
      %1667 = vadd.xlane.f32.xlu0 %v1658
      %v1668 = vpop.xlane.xlu0 %1667
      %1669 = vadd.xlane.f32.xlu0 %v1659
      %v1670 = vpop.xlane.xlu0 %1669
      %1671 = vadd.xlane.f32.xlu0 %v1660
      %v1672 = vpop.xlane.xlu0 %1671
      %1673 = vadd.xlane.f32.xlu0 %v1661
      %v1674 = vpop.xlane.xlu0 %1673
      %1675 = vadd.xlane.f32.xlu0 %v1662
      %v1676 = vpop.xlane.xlu0 %1675
      %1677 = vadd.xlane.f32.xlu0 %v1663
      %v1678 = vpop.xlane.xlu0 %1677
      %1679 = vadd.xlane.f32.xlu0 %v1664
      %v1680 = vpop.xlane.xlu0 %1679
      %1681 = vadd.xlane.f32.xlu0 %v1665
      %v1682 = vpop.xlane.xlu0 %1681
      %1683 = vadd.xlane.f32.xlu0 %v1666
      %v1684 = vpop.xlane.xlu0 %1683
      %v1685 = vmul.f32 %v1668, 0.0625
      %v1686 = vmul.f32 %v1670, 0.0625
      %v1687 = vmul.f32 %v1672, 0.0625
      %v1688 = vmul.f32 %v1674, 0.0625
      %v1689 = vmul.f32 %v1676, 0.0625
      %v1690 = vmul.f32 %v1678, 0.0625
      %v1691 = vmul.f32 %v1680, 0.0625
      %v1692 = vmul.f32 %v1682, 0.0625
      %v1693 = vmul.f32 %v1684, 0.0625
      %v1694 = vmul.f32 %v1649, %v1649
      %v1695 = vmul.f32 %v1650, %v1650
      %v1696 = vmul.f32 %v1651, %v1651
      %v1697 = vmul.f32 %v1652, %v1652
      %v1698 = vmul.f32 %v1653, %v1653
      %v1699 = vmul.f32 %v1654, %v1654
      %v1700 = vmul.f32 %v1655, %v1655
      %v1701 = vmul.f32 %v1656, %v1656
      %v1702 = vmul.f32 %v1657, %v1657
      %v1703 = vsub.f32 %v1685, %v1694
      %v1704 = vsub.f32 %v1686, %v1695
      %v1705 = vsub.f32 %v1687, %v1696
      %v1706 = vsub.f32 %v1688, %v1697
      %v1707 = vsub.f32 %v1689, %v1698
      %v1708 = vsub.f32 %v1690, %v1699
      %v1709 = vsub.f32 %v1691, %v1700
      %v1710 = vsub.f32 %v1692, %v1701
      %v1711 = vsub.f32 %v1693, %v1702
      %v1712 = vsub.f32 %v1622, %v1649
      %v1713 = vsub.f32 %v1623, %v1650
      %v1714 = vsub.f32 %v1624, %v1651
      %v1715 = vsub.f32 %v1625, %v1652
      %v1716 = vsub.f32 %v1626, %v1653
      %v1717 = vsub.f32 %v1627, %v1654
      %v1718 = vsub.f32 %v1628, %v1655
      %v1719 = vsub.f32 %v1629, %v1656
      %v1720 = vsub.f32 %v1630, %v1657
      %v1721 = vadd.f32 %v1703, 1e-05
      %v1722 = vadd.f32 %v1704, 1e-05
      %v1723 = vadd.f32 %v1705, 1e-05
      %v1724 = vadd.f32 %v1706, 1e-05
      %v1725 = vadd.f32 %v1707, 1e-05
      %v1726 = vadd.f32 %v1708, 1e-05
      %v1727 = vadd.f32 %v1709, 1e-05
      %v1728 = vadd.f32 %v1710, 1e-05
      %v1729 = vadd.f32 %v1711, 1e-05
      %v1730 = vrsqrt.pop %v1721
      %v1731 = vrsqrt.pop %v1722
      %v1732 = vrsqrt.pop %v1723
      %v1733 = vrsqrt.pop %v1724
      %v1734 = vrsqrt.pop %v1725
      %v1735 = vrsqrt.pop %v1726
      %v1736 = vrsqrt.pop %v1727
      %v1737 = vrsqrt.pop %v1728
      %v1738 = vrsqrt.pop %v1729
      %v1739 = vmul.f32 %v1712, %v1730
      %v1740 = vmul.f32 %v1713, %v1731
      %v1741 = vmul.f32 %v1714, %v1732
      %v1742 = vmul.f32 %v1715, %v1733
      %v1743 = vmul.f32 %v1716, %v1734
      %v1744 = vmul.f32 %v1717, %v1735
      %v1745 = vmul.f32 %v1718, %v1736
      %v1746 = vmul.f32 %v1719, %v1737
      %v1747 = vmul.f32 %v1720, %v1738
      %v1748 = vld [vmem:[%s8] sm:$0x1]
      %v1750 = vlaneseq
      %v1751 = vshrl.u32 %v1750, 7
      %v1752 = vsub.s32 0, %v1751
      %v1753 = vrot.slane %v1748, %v1752
      %v1755 = vmul.f32 %v1739, %v1753
      %v1756 = vmul.f32 %v1740, %v1753
      %v1757 = vmul.f32 %v1741, %v1753
      %v1758 = vmul.f32 %v1742, %v1753
      %v1759 = vmul.f32 %v1743, %v1753
      %v1760 = vmul.f32 %v1744, %v1753
      %v1761 = vmul.f32 %v1745, %v1753
      %v1762 = vmul.f32 %v1746, %v1753
      %v1763 = vmul.f32 %v1747, %v1753
      %v1764 = vld [vmem:[%s9] sm:$0x1]
      %v1766 = vlaneseq
      %v1767 = vshrl.u32 %v1766, 7
      %v1768 = vsub.s32 0, %v1767
      %v1769 = vrot.slane %v1764, %v1768
      %v1771 = vadd.f32 %v1755, %v1769
      %v1772 = vadd.f32 %v1756, %v1769
      %v1773 = vadd.f32 %v1757, %v1769
      %v1774 = vadd.f32 %v1758, %v1769
      %v1775 = vadd.f32 %v1759, %v1769
      %v1776 = vadd.f32 %v1760, %v1769
      %v1777 = vadd.f32 %v1761, %v1769
      %v1778 = vadd.f32 %v1762, %v1769
      %v1779 = vadd.f32 %v1763, %v1769
      %v1780 = vpack.c.bf16 %v1772, %v1771
      %v1781 = vpack.c.bf16 %v1774, %v1773
      %v1782 = vpack.c.bf16 %v1776, %v1775
      %v1783 = vpack.c.bf16 %v1778, %v1777
      %v1784 = vpack.c.bf16 %v1779, %v1779
      %v1785 = vld [vmem:[%s10] sm:$0xf]
      %v1786 = vld [vmem:[%s10 + $0x4] sm:$0xf]
      %v1787 = vld [vmem:[%s10 + $0x8] sm:$0xf]
      %v1788 = vld [vmem:[%s10 + $0xc] sm:$0xf]
      %v1789 = vld [vmem:[%s10 + $0x10] sm:$0xf]
      %v1790 = vld [vmem:[%s10 + $0x14] sm:$0xf]
      %v1791 = vld [vmem:[%s10 + $0x18] sm:$0xf]
      %v1792 = vld [vmem:[%s10 + $0x1c] sm:$0xf]
      %v1793 = vld [vmem:[%s10 + $0x20] sm:$0xf]
      %v1794 = vld [vmem:[%s10 + $0x24] sm:$0xf]
      %v1795 = vld [vmem:[%s10 + $0x28] sm:$0xf]
      %v1796 = vld [vmem:[%s10 + $0x2c] sm:$0xf]
      %v1797 = vld [vmem:[%s10 + $0x30] sm:$0xf]
      %v1798 = vld [vmem:[%s10 + $0x34] sm:$0xf]
      %v1799 = vld [vmem:[%s10 + $0x38] sm:$0xf]
      %v1800 = vld [vmem:[%s10 + $0x3c] sm:$0xf]
      %v1801 = vld [vmem:[%s11] sm:$0x1]
      %v1803 = vlaneseq
      %v1804 = vshrl.u32 %v1803, 7
      %v1805 = vsub.s32 0, %v1804
      %v1806 = vrot.slane %v1801, %v1805
      %v1824 = vunpack.c.l.b16 %v1785
      %v1825 = vunpack.c.l.b16 %v1786
      %v1826 = vunpack.c.l.b16 %v1787
      %v1827 = vunpack.c.l.b16 %v1788
      %v1828 = vunpack.c.l.b16 %v1789
      %v1829 = vunpack.c.l.b16 %v1790
      %v1830 = vunpack.c.l.b16 %v1791
      %v1831 = vunpack.c.l.b16 %v1792
      %v1832 = vunpack.c.l.b16 %v1793
      %v1833 = vunpack.c.l.b16 %v1794
      %v1834 = vunpack.c.l.b16 %v1795
      %v1835 = vunpack.c.l.b16 %v1796
      %v1836 = vunpack.c.l.b16 %v1797
      %v1837 = vunpack.c.l.b16 %v1798
      %v1838 = vunpack.c.l.b16 %v1799
      %v1839 = vunpack.c.l.b16 %v1800
      %v1840 = vpack.c.b16 %v1825, %v1824
      %v1841 = vpack.c.b16 %v1827, %v1826
      %v1842 = vpack.c.b16 %v1829, %v1828
      %v1843 = vpack.c.b16 %v1831, %v1830
      %v1844 = vpack.c.b16 %v1833, %v1832
      %v1845 = vpack.c.b16 %v1835, %v1834
      %v1846 = vpack.c.b16 %v1837, %v1836
      %v1847 = vpack.c.b16 %v1839, %v1838
      %1856 = vmatprep.subr.bf16.mxu0 0
      %1857 = vmatpush1.bf16.msra.mxu0 %v1847
      %1858 = vmatprep.subr.bf16.mxu0 0
      %1859 = vmatpush1.bf16.msra.mxu0 %v1846
      %1860 = vmatprep.subr.bf16.mxu0 0
      %1861 = vmatpush1.bf16.msra.mxu0 %v1845
      %1862 = vmatprep.subr.bf16.mxu0 0
      %1863 = vmatpush1.bf16.msra.mxu0 %v1844
      %1864 = vmatprep.subr.bf16.mxu0 0
      %1865 = vmatpush1.bf16.msra.mxu0 %v1843
      %1866 = vmatprep.subr.bf16.mxu0 0
      %1867 = vmatpush1.bf16.msra.mxu0 %v1842
      %1868 = vmatprep.subr.bf16.mxu0 0
      %1869 = vmatpush1.bf16.msra.mxu0 %v1841
      %1870 = vmatprep.subr.bf16.mxu0 0
      %1871 = vmatpush1.bf16.msra.mxu0 %v1840
      %1872 = vmatprep.subr.bf16.mxu0 0
      %1873 = vmatpush2.bf16.msra.mxu0 0
      %1874 = vmatprep.subr.bf16.mxu0 0
      %1875 = vmatpush2.bf16.msra.mxu0 0
      %1876 = vmatprep.subr.bf16.mxu0 0
      %1877 = vmatpush2.bf16.msra.mxu0 0
      %1878 = vmatprep.subr.bf16.mxu0 0
      %1879 = vmatpush2.bf16.msra.mxu0 0
      %1880 = vmatprep.subr.bf16.mxu0 0
      %1881 = vmatpush2.bf16.msra.mxu0 0
      %1882 = vmatprep.subr.bf16.mxu0 0
      %1883 = vmatpush2.bf16.msra.mxu0 0
      %1884 = vmatprep.subr.bf16.mxu0 0
      %1885 = vmatpush2.bf16.msra.mxu0 0
      %1886 = vmatprep.subr.bf16.mxu0 0
      %1887 = vmatpush2.bf16.msra.mxu0 0
      %1888 = vmatprep.mubr.bf16.mxu0 0
      %1889 = vmatmul.mubr.bf16.gmra.mxu0 %v1780
      %v1890 = vpop.f32.mrf.mxu0
      %v1891 = vadd.f32 %v1806, %v1890
      %v1892 = vpop.f32.mrf.mxu0
      %v1893 = vpop.f32.mrf.mxu0
      %v1894 = vadd.f32 %v1806, %v1893
      %v1895 = vpop.f32.mrf.mxu0
      %1896 = vmatprep.mubr.bf16.mxu0 0
      %1897 = vmatmul.mubr.bf16.gmra.mxu0 %v1781
      %v1898 = vpop.f32.mrf.mxu0
      %v1899 = vadd.f32 %v1806, %v1898
      %v1900 = vpop.f32.mrf.mxu0
      %v1901 = vpop.f32.mrf.mxu0
      %v1902 = vadd.f32 %v1806, %v1901
      %v1903 = vpop.f32.mrf.mxu0
      %1904 = vmatprep.mubr.bf16.mxu0 0
      %1905 = vmatmul.mubr.bf16.gmra.mxu0 %v1782
      %v1906 = vpop.f32.mrf.mxu0
      %v1907 = vadd.f32 %v1806, %v1906
      %v1908 = vpop.f32.mrf.mxu0
      %v1909 = vpop.f32.mrf.mxu0
      %v1910 = vadd.f32 %v1806, %v1909
      %v1911 = vpop.f32.mrf.mxu0
      %1912 = vmatprep.mubr.bf16.mxu0 0
      %1913 = vmatmul.mubr.bf16.gmra.mxu0 %v1783
      %v1914 = vpop.f32.mrf.mxu0
      %v1915 = vadd.f32 %v1806, %v1914
      %v1916 = vpop.f32.mrf.mxu0
      %v1917 = vpop.f32.mrf.mxu0
      %v1918 = vadd.f32 %v1806, %v1917
      %v1919 = vpop.f32.mrf.mxu0
      %1920 = vmatprep.mubr.bf16.mxu0 0
      %1921 = vmatmul.mubr.bf16.gmra.mxu0 %v1784
      %v1922 = vpop.f32.mrf.mxu0
      %v1923 = vadd.f32 %v1806, %v1922
      %v1924 = vpop.f32.mrf.mxu0
      %v1925 = vpop.f32.mrf.mxu0
      %v1926 = vpop.f32.mrf.mxu0
      %1927 = vdwg.mxu0
      %v1928 = vmul.f32 %v1891, 0.5
      %v1929 = vmul.f32 %v1894, 0.5
      %v1930 = vmul.f32 %v1899, 0.5
      %v1931 = vmul.f32 %v1902, 0.5
      %v1932 = vmul.f32 %v1907, 0.5
      %v1933 = vmul.f32 %v1910, 0.5
      %v1934 = vmul.f32 %v1915, 0.5
      %v1935 = vmul.f32 %v1918, 0.5
      %v1936 = vmul.f32 %v1923, 0.5
      %v1937 = vmul.f32 %v1891, 0.044715
      %v1938 = vmul.f32 %v1894, 0.044715
      %v1939 = vmul.f32 %v1899, 0.044715
      %v1940 = vmul.f32 %v1902, 0.044715
      %v1941 = vmul.f32 %v1907, 0.044715
      %v1942 = vmul.f32 %v1910, 0.044715
      %v1943 = vmul.f32 %v1915, 0.044715
      %v1944 = vmul.f32 %v1918, 0.044715
      %v1945 = vmul.f32 %v1923, 0.044715
      %v1946 = vmul.f32 %v1937, %v1891
      %v1947 = vmul.f32 %v1938, %v1894
      %v1948 = vmul.f32 %v1939, %v1899
      %v1949 = vmul.f32 %v1940, %v1902
      %v1950 = vmul.f32 %v1941, %v1907
      %v1951 = vmul.f32 %v1942, %v1910
      %v1952 = vmul.f32 %v1943, %v1915
      %v1953 = vmul.f32 %v1944, %v1918
      %v1954 = vmul.f32 %v1945, %v1923
      %v1955 = vmul.f32 %v1946, %v1891
      %v1956 = vmul.f32 %v1947, %v1894
      %v1957 = vmul.f32 %v1948, %v1899
      %v1958 = vmul.f32 %v1949, %v1902
      %v1959 = vmul.f32 %v1950, %v1907
      %v1960 = vmul.f32 %v1951, %v1910
      %v1961 = vmul.f32 %v1952, %v1915
      %v1962 = vmul.f32 %v1953, %v1918
      %v1963 = vmul.f32 %v1954, %v1923
      %v1964 = vadd.f32 %v1891, %v1955
      %v1965 = vadd.f32 %v1894, %v1956
      %v1966 = vadd.f32 %v1899, %v1957
      %v1967 = vadd.f32 %v1902, %v1958
      %v1968 = vadd.f32 %v1907, %v1959
      %v1969 = vadd.f32 %v1910, %v1960
      %v1970 = vadd.f32 %v1915, %v1961
      %v1971 = vadd.f32 %v1918, %v1962
      %v1972 = vadd.f32 %v1923, %v1963
      %v1973 = vmul.f32 %v1964, 0.7978846
      %v1974 = vmul.f32 %v1965, 0.7978846
      %v1975 = vmul.f32 %v1966, 0.7978846
      %v1976 = vmul.f32 %v1967, 0.7978846
      %v1977 = vmul.f32 %v1968, 0.7978846
      %v1978 = vmul.f32 %v1969, 0.7978846
      %v1979 = vmul.f32 %v1970, 0.7978846
      %v1980 = vmul.f32 %v1971, 0.7978846
      %v1981 = vmul.f32 %v1972, 0.7978846
      %v1982 = vtanh.pop %v1973
      %v1983 = vtanh.pop %v1974
      %v1984 = vtanh.pop %v1975
      %v1985 = vtanh.pop %v1976
      %v1986 = vtanh.pop %v1977
      %v1987 = vtanh.pop %v1978
      %v1988 = vtanh.pop %v1979
      %v1989 = vtanh.pop %v1980
      %v1990 = vtanh.pop %v1981
      %v1991 = vadd.f32 %v1982, 1.0
      %v1992 = vadd.f32 %v1983, 1.0
      %v1993 = vadd.f32 %v1984, 1.0
      %v1994 = vadd.f32 %v1985, 1.0
      %v1995 = vadd.f32 %v1986, 1.0
      %v1996 = vadd.f32 %v1987, 1.0
      %v1997 = vadd.f32 %v1988, 1.0
      %v1998 = vadd.f32 %v1989, 1.0
      %v1999 = vadd.f32 %v1990, 1.0
      %v2000 = vmul.f32 %v1928, %v1991
      %v2001 = vmul.f32 %v1929, %v1992
      %v2002 = vmul.f32 %v1930, %v1993
      %v2003 = vmul.f32 %v1931, %v1994
      %v2004 = vmul.f32 %v1932, %v1995
      %v2005 = vmul.f32 %v1933, %v1996
      %v2006 = vmul.f32 %v1934, %v1997
      %v2007 = vmul.f32 %v1935, %v1998
      %v2008 = vmul.f32 %v1936, %v1999
      %v2009 = vpack.c.bf16 %v2001, %v2000
      %v2010 = vpack.c.bf16 %v2003, %v2002
      %v2011 = vpack.c.bf16 %v2005, %v2004
      %v2012 = vpack.c.bf16 %v2007, %v2006
      %v2013 = vpack.c.bf16 %v2008, %v2008
      %v2014 = vld [vmem:[%s12] sm:$0xf]
      %v2015 = vld [vmem:[%s12 + $0x4] sm:$0xf]
      %v2016 = vld [vmem:[%s12 + $0x8] sm:$0xf]
      %v2017 = vld [vmem:[%s12 + $0xc] sm:$0xf]
      %v2018 = vld [vmem:[%s12 + $0x10] sm:$0xf]
      %v2019 = vld [vmem:[%s12 + $0x14] sm:$0xf]
      %v2020 = vld [vmem:[%s12 + $0x18] sm:$0xf]
      %v2021 = vld [vmem:[%s12 + $0x1c] sm:$0xf]
      %v2022 = vld [vmem:[%s12 + $0x20] sm:$0xf]
      %v2023 = vld [vmem:[%s12 + $0x24] sm:$0xf]
      %v2024 = vld [vmem:[%s12 + $0x28] sm:$0xf]
      %v2025 = vld [vmem:[%s12 + $0x2c] sm:$0xf]
      %v2026 = vld [vmem:[%s12 + $0x30] sm:$0xf]
      %v2027 = vld [vmem:[%s12 + $0x34] sm:$0xf]
      %v2028 = vld [vmem:[%s12 + $0x38] sm:$0xf]
      %v2029 = vld [vmem:[%s12 + $0x3c] sm:$0xf]
      %v2030 = vld [vmem:[%s13] sm:$0x1]
      %v2032 = vlaneseq
      %v2033 = vshrl.u32 %v2032, 7
      %v2034 = vsub.s32 0, %v2033
      %v2035 = vrot.slane %v2030, %v2034
      %v2053 = vunpack.c.l.b16 %v2014
      %v2054 = vunpack.c.l.b16 %v2015
      %v2055 = vunpack.c.l.b16 %v2016
      %v2056 = vunpack.c.l.b16 %v2017
      %v2057 = vunpack.c.l.b16 %v2018
      %v2058 = vunpack.c.l.b16 %v2019
      %v2059 = vunpack.c.l.b16 %v2020
      %v2060 = vunpack.c.l.b16 %v2021
      %v2061 = vunpack.c.l.b16 %v2022
      %v2062 = vunpack.c.l.b16 %v2023
      %v2063 = vunpack.c.l.b16 %v2024
      %v2064 = vunpack.c.l.b16 %v2025
      %v2065 = vunpack.c.l.b16 %v2026
      %v2066 = vunpack.c.l.b16 %v2027
      %v2067 = vunpack.c.l.b16 %v2028
      %v2068 = vunpack.c.l.b16 %v2029
      %v2069 = vpack.c.b16 %v2054, %v2053
      %v2070 = vpack.c.b16 %v2056, %v2055
      %v2071 = vpack.c.b16 %v2058, %v2057
      %v2072 = vpack.c.b16 %v2060, %v2059
      %v2073 = vpack.c.b16 %v2062, %v2061
      %v2074 = vpack.c.b16 %v2064, %v2063
      %v2075 = vpack.c.b16 %v2066, %v2065
      %v2076 = vpack.c.b16 %v2068, %v2067
      %2085 = vmatprep.subr.bf16.mxu0 0
      %2086 = vmatpush1.bf16.msra.mxu0 %v2076
      %2087 = vmatprep.subr.bf16.mxu0 0
      %2088 = vmatpush1.bf16.msra.mxu0 %v2075
      %2089 = vmatprep.subr.bf16.mxu0 0
      %2090 = vmatpush1.bf16.msra.mxu0 %v2074
      %2091 = vmatprep.subr.bf16.mxu0 0
      %2092 = vmatpush1.bf16.msra.mxu0 %v2073
      %2093 = vmatprep.subr.bf16.mxu0 0
      %2094 = vmatpush1.bf16.msra.mxu0 %v2072
      %2095 = vmatprep.subr.bf16.mxu0 0
      %2096 = vmatpush1.bf16.msra.mxu0 %v2071
      %2097 = vmatprep.subr.bf16.mxu0 0
      %2098 = vmatpush1.bf16.msra.mxu0 %v2070
      %2099 = vmatprep.subr.bf16.mxu0 0
      %2100 = vmatpush1.bf16.msra.mxu0 %v2069
      %2101 = vmatprep.subr.bf16.mxu0 0
      %2102 = vmatpush2.bf16.msra.mxu0 0
      %2103 = vmatprep.subr.bf16.mxu0 0
      %2104 = vmatpush2.bf16.msra.mxu0 0
      %2105 = vmatprep.subr.bf16.mxu0 0
      %2106 = vmatpush2.bf16.msra.mxu0 0
      %2107 = vmatprep.subr.bf16.mxu0 0
      %2108 = vmatpush2.bf16.msra.mxu0 0
      %2109 = vmatprep.subr.bf16.mxu0 0
      %2110 = vmatpush2.bf16.msra.mxu0 0
      %2111 = vmatprep.subr.bf16.mxu0 0
      %2112 = vmatpush2.bf16.msra.mxu0 0
      %2113 = vmatprep.subr.bf16.mxu0 0
      %2114 = vmatpush2.bf16.msra.mxu0 0
      %2115 = vmatprep.subr.bf16.mxu0 0
      %2116 = vmatpush2.bf16.msra.mxu0 0
      %2117 = vmatprep.mubr.bf16.mxu0 0
      %2118 = vmatmul.mubr.bf16.gmra.mxu0 %v2009
      %v2119 = vpop.f32.mrf.mxu0
      %v2120 = vadd.f32 %v2035, %v2119
      %v2121 = vpop.f32.mrf.mxu0
      %v2122 = vpop.f32.mrf.mxu0
      %v2123 = vadd.f32 %v2035, %v2122
      %v2124 = vpop.f32.mrf.mxu0
      %2125 = vmatprep.mubr.bf16.mxu0 0
      %2126 = vmatmul.mubr.bf16.gmra.mxu0 %v2010
      %v2127 = vpop.f32.mrf.mxu0
      %v2128 = vadd.f32 %v2035, %v2127
      %v2129 = vpop.f32.mrf.mxu0
      %v2130 = vpop.f32.mrf.mxu0
      %v2131 = vadd.f32 %v2035, %v2130
      %v2132 = vpop.f32.mrf.mxu0
      %2133 = vmatprep.mubr.bf16.mxu0 0
      %2134 = vmatmul.mubr.bf16.gmra.mxu0 %v2011
      %v2135 = vpop.f32.mrf.mxu0
      %v2136 = vadd.f32 %v2035, %v2135
      %v2137 = vpop.f32.mrf.mxu0
      %v2138 = vpop.f32.mrf.mxu0
      %v2139 = vadd.f32 %v2035, %v2138
      %v2140 = vpop.f32.mrf.mxu0
      %2141 = vmatprep.mubr.bf16.mxu0 0
      %2142 = vmatmul.mubr.bf16.gmra.mxu0 %v2012
      %v2143 = vpop.f32.mrf.mxu0
      %v2144 = vadd.f32 %v2035, %v2143
      %v2145 = vpop.f32.mrf.mxu0
      %v2146 = vpop.f32.mrf.mxu0
      %v2147 = vadd.f32 %v2035, %v2146
      %v2148 = vpop.f32.mrf.mxu0
      %2149 = vmatprep.mubr.bf16.mxu0 0
      %2150 = vmatmul.mubr.bf16.gmra.mxu0 %v2013
      %v2151 = vpop.f32.mrf.mxu0
      %v2152 = vadd.f32 %v2035, %v2151
      %v2153 = vpop.f32.mrf.mxu0
      %v2154 = vpop.f32.mrf.mxu0
      %v2155 = vpop.f32.mrf.mxu0
      %2156 = vdwg.mxu0
      %v2157 = vadd.f32 %v1622, %v2120
      %v2158 = vadd.f32 %v1623, %v2123
      %v2159 = vadd.f32 %v1624, %v2128
      %v2160 = vadd.f32 %v1625, %v2131
      %v2161 = vadd.f32 %v1626, %v2136
      %v2162 = vadd.f32 %v1627, %v2139
      %v2163 = vadd.f32 %v1628, %v2144
      %v2164 = vadd.f32 %v1629, %v2147
      %v2165 = vadd.f32 %v1630, %v2152
      %v2166 = vpack.c.bf16 %v2158, %v2157
      %v2167 = vpack.c.bf16 %v2160, %v2159
      %v2168 = vpack.c.bf16 %v2162, %v2161
      %v2169 = vpack.c.bf16 %v2164, %v2163
      %v2170 = vpack.c.bf16 %v2165, %v2165
      %v2176 = vunpack.c.l.b16 %v2166
      %v2177 = vunpack.c.h.b16 %v2166
      %v2178 = vunpack.c.l.b16 %v2167
      %v2179 = vunpack.c.h.b16 %v2167
      %v2180 = vunpack.c.l.b16 %v2168
      %v2181 = vunpack.c.h.b16 %v2168
      %v2182 = vunpack.c.l.b16 %v2169
      %v2183 = vunpack.c.h.b16 %v2169
      %v2184 = vunpack.c.l.b16 %v2170
      %v2185 = vpack.c.b16 %v2176, %v2176
      %v2186 = vpack.c.b16 %v2177, %v2177
      %v2187 = vpack.c.b16 %v2178, %v2178
      %v2188 = vpack.c.b16 %v2179, %v2179
      %v2189 = vpack.c.b16 %v2180, %v2180
      %v2190 = vpack.c.b16 %v2181, %v2181
      %v2191 = vpack.c.b16 %v2182, %v2182
      %v2192 = vpack.c.b16 %v2183, %v2183
      %v2193 = vpack.c.b16 %v2184, %v2184
      %2203 = vst [vmem:[%s467] sm:$0xf] %v2185
      %2204 = vst [vmem:[%s467 + $0x4] sm:$0xf] %v2186
      %2205 = vst [vmem:[%s467 + $0x8] sm:$0xf] %v2187
      %2206 = vst [vmem:[%s467 + $0xc] sm:$0xf] %v2188
      %2207 = vst [vmem:[%s467 + $0x10] sm:$0xf] %v2189
      %2208 = vst [vmem:[%s467 + $0x14] sm:$0xf] %v2190
      %2209 = vst [vmem:[%s467 + $0x18] sm:$0xf] %v2191
      %2210 = vst [vmem:[%s467 + $0x1c] sm:$0xf] %v2192
      %2211 = vst [vmem:[%s467 + $0x20] sm:$0xf] %v2193
      %p2212 = scmp.lt.s32.totalorder %s25, 1
      %s2213 = scalar_select %p2212, %s25, 1
      %s2214 = smul.addr %s2213, 9
      %s2215 = smul.addr %s2214, 4
      %s2216 = scalar_lea.vmem %s14, %s2215
      // Predicated region
      $region77: #{downsample_token_forward.1} parent=75 // pred_check
        %p2217 = pneg %p342
      $region78: #{downsample_token_forward.1} parent=75 // pred_check_branch
        %2219 = sbr.rel (%p2217) target = $region80
      $region79: #{downsample_token_forward.1} parent=75 // pred_region
        _
      $region80: #{downsample_token_forward.1} parent=75 // pred_fallthru
        _
    $region76: #{downsample_token_forward.1} parent=5 // pred_fallthru
      _
    %p2220 = scmp.le.s32.totalorder 2, %s20
    // Predicated region
    $region81: #{downsample_token_forward.1} parent=5 // pred_check
      %p2221 = pneg %p2220
    $region82: #{downsample_token_forward.1} parent=5 // pred_check_branch
      %2223 = sbr.rel (%p2221) target = $region84
    $region83: #{downsample_token_forward.1} parent=5 // pred_region
      %s2224 = ssub.s32 %s20, 2
      // Predicated region
      $region85: #{downsample_token_forward.1} parent=83 // pred_check
        %p2225 = pneg %p348
      $region86: #{downsample_token_forward.1} parent=83 // pred_check_branch
        %2227 = sbr.rel (%p2225) target = $region88
      $region87: #{downsample_token_forward.1} parent=83 // pred_region
        %p2228 = scmp.lt.s32.totalorder %s26, 1
        %s2229 = scalar_select %p2228, %s26, 1
        %s2230 = smul.addr %s2229, 9
        %s2231 = smul.addr %s2230, 4
        %s2232 = scalar_lea.vmem %s14, %s2231
      $region88: #{downsample_token_forward.1} parent=83 // pred_fallthru
        _
    $region84: #{downsample_token_forward.1} parent=5 // pred_fallthru
      _
  $region6: #{downsample_token_forward.1} parent=0 // loop_footer
    %s24 = sadd.s32 1, %s20
  $region7: #{downsample_token_forward.1} parent=0 // loop_footer_branch
    %19 = sbr.rel target = $region3
  $region8: #{downsample_token_forward.1} parent=0 // loop_exit
    _

</llo_original>
